<compile_context>
chip_gen: v7x
topology: tpu7x:2x2x1
jax: 0.10.0
libtpu: 0.0.40
codegen_flags: <defaults>
</compile_context>

<pallas_src>
import jax
import jax.numpy as jnp
from jax import lax
from jax.experimental import pallas as pl
from jax.experimental.pallas import tpu as pltpu


def normalize_adj(A):
    """JAX port of the PyTorch normalize_adj (one-time glue; plain XLA)."""
    n = A.shape[0]
    A_hat = A + jnp.eye(n, dtype=A.dtype)
    deg = jnp.sum(A_hat, axis=1)
    d_inv_sqrt = 1.0 / jnp.sqrt(deg)
    # D^{-1/2} @ A_hat @ D^{-1/2} as broadcasts (diagonal matmuls).
    return d_inv_sqrt[:, None] * A_hat * d_inv_sqrt[None, :]


# ---------------------------------------------------------------------------
# Kernel
# ---------------------------------------------------------------------------

def _graphconv_kernel(abar_ref, wt_ref, x_ref, o_ref):
    # abar_ref: (N, N)         resident
    # wt_ref:   (C_in, C_out)  resident (W transposed)
    # x_ref:    (bt, N, C_in)  natural-layout activation tile
    # o_ref:    (bt, N, C_out) natural-layout output tile
    bt = x_ref.shape[0]
    abar = abar_ref[...]
    wt = wt_ref[...]

    def body(b, carry):
        xb = x_ref[b]                                               # (N, C_in)
        # Graph contraction first: fewer FLOPs when C_in <= C_out.
        yb = jnp.dot(abar, xb, preferred_element_type=jnp.float32)  # (N, C_in) f32
        # Cast the intermediate to the weight dtype so the second matmul also
        # runs on the fast (e.g. bf16) MXU path; accumulation stays f32.
        ob = jnp.dot(yb.astype(wt.dtype), wt,
                     preferred_element_type=jnp.float32)            # (N, C_out) f32
        o_ref[b] = ob.astype(o_ref.dtype)
        return carry

    # No reshapes / transposes anywhere: lanes stay the channel axis, stores
    # are straight per-slice writes into the output block.
    if bt <= 32:
        # Short fixed trip count: unroll for LLO scheduling visibility.
        lax.fori_loop(0, bt, body, 0, unroll=True)
    else:
        lax.fori_loop(0, bt, body, 0)


# ---------------------------------------------------------------------------
# Tiling / VMEM sizing helpers
# ---------------------------------------------------------------------------

_PIPELINE_VMEM_BUDGET = 24 * 1024 * 1024   # conservative: safe on v7x (64 MiB)


def _round_up(v, m):
    return (v + m - 1) // m * m


def _block_vmem_bytes(lead, sub, lane, itemsize):
    """Padded VMEM footprint of a (lead, sub, lane) block under (8,128) tiling."""
    return lead * _round_up(max(sub, 1), 8) * _round_up(max(lane, 1), 128) * itemsize


def _choose_bt_tile(bt_total, n, c_in, c_out, in_itemsize, out_itemsize,
                    budget_bytes, min_steps=2):
    """Largest divisor of bt_total whose double-buffered x/out blocks fit the
    VMEM budget, preferring tiles that leave >= min_steps grid steps so the
    'parallel' grid axis can be sharded across v7x's two TensorCores."""
    divisors = sorted({d for i in range(1, int(bt_total ** 0.5) + 1)
                       if bt_total % i == 0
                       for d in (i, bt_total // i)})

    def fits(bt):
        ws = (2 * _block_vmem_bytes(bt, n, c_in, in_itemsize) +
              2 * _block_vmem_bytes(bt, n, c_out, out_itemsize))
        return ws <= budget_bytes

    candidates = [d for d in divisors if fits(d)]
    if not candidates:
        return 1
    multi = [d for d in candidates if bt_total // d >= min_steps]
    return max(multi) if multi else max(candidates)


# ---------------------------------------------------------------------------
# Wrapper
# ---------------------------------------------------------------------------

def graph_conv(x, abar, weight, *, mxu_dtype=None, bt_tile=None,
               vmem_limit_bytes=None, x_buffering=None):
    """STGCN GraphConv forward.

    x:      (B, T, N, C_in)
    abar:   (N, N) normalized adjacency
    weight: (C_out, C_in)   (nn.Linear(in, out, bias=False).weight)

    mxu_dtype: optionally run the matmuls in e.g. jnp.bfloat16 (fast MXU path
      on v5e/v6e/v7x; f32 accumulation; output keeps x.dtype).  For best
      results pass x/abar/weight already in that dtype so the wrapper cast is
      a no-op (a standalone astype costs one extra HBM pass over x).
    bt_tile / vmem_limit_bytes / x_buffering: per-generation tuning knobs
      (tile over the B*T axis, scoped VMEM limit, input pipeline depth).
    """
    B, T, N, C_in = x.shape
    C_out, C_in_w = weight.shape
    assert C_in_w == C_in, "weight must have shape (C_out, C_in)"
    BT = B * T
    out_dtype = x.dtype

    # Free reshapes only — NO transpose / pad / extra HBM pass over x or out.
    x_r = x.reshape(BT, N, C_in)
    w_t = weight.T                                   # (C_in, C_out), tiny, one-time

    abar_c, w_c, x_c = abar, w_t, x_r
    if mxu_dtype is not None:
        # TODO(synk): fuse this cast into the pallas_call operands
        # (CompilerParams(allow_input_fusion=...)) or keep activations in
        # mxu_dtype upstream; a standalone astype is one extra HBM pass.
        abar_c = abar_c.astype(mxu_dtype)
        w_c = w_c.astype(mxu_dtype)
        x_c = x_c.astype(mxu_dtype)

    in_itemsize = jnp.dtype(x_c.dtype).itemsize
    out_itemsize = jnp.dtype(out_dtype).itemsize

    if bt_tile is None:
        bt_tile = _choose_bt_tile(BT, N, C_in, C_out, in_itemsize, out_itemsize,
                                  _PIPELINE_VMEM_BUDGET)
    assert BT % bt_tile == 0, "bt_tile must divide B*T"
    grid = (BT // bt_tile,)

    # Explicit scoped-VMEM limit: defaults are only 16/32 MiB (v5e/v6e); cap at
    # 64 MiB so the request never exceeds v7x's physical VMEM.
    if vmem_limit_bytes is None:
        step_bytes = (2 * _block_vmem_bytes(bt_tile, N, C_in, in_itemsize) +
                      2 * _block_vmem_bytes(bt_tile, N, C_out, out_itemsize) +
                      2 * _block_vmem_bytes(1, N, N, in_itemsize) +
                      2 * _block_vmem_bytes(1, C_in, C_out, in_itemsize) +
                      4 * _block_vmem_bytes(1, N, max(C_in, C_out), 4))
        vmem_limit_bytes = int(min(64 * 2**20, max(32 * 2**20, 2 * step_bytes)))

    x_index_map = lambda i: (i, 0, 0)
    if x_buffering is None:
        x_spec = pl.BlockSpec((bt_tile, N, C_in), x_index_map)
    else:
        # Deeper input pipelining for small tiles where the DMA becomes exposed.
        x_spec = pl.BlockSpec((bt_tile, N, C_in), x_index_map,
                              pipeline_mode=pl.Buffered(x_buffering))

    cost = pl.CostEstimate(
        flops=2 * BT * N * (N * C_in + C_in * C_out),
        transcendentals=0,
        bytes_accessed=(x_c.size * in_itemsize
                        + BT * N * C_out * out_itemsize
                        + abar_c.size * jnp.dtype(abar_c.dtype).itemsize
                        + w_c.size * jnp.dtype(w_c.dtype).itemsize),
    )

    out_r = pl.pallas_call(
        _graphconv_kernel,
        out_shape=jax.ShapeDtypeStruct((BT, N, C_out), out_dtype),
        grid=grid,
        in_specs=[
            pl.BlockSpec((N, N), lambda i: (0, 0)),           # Abar, resident
            pl.BlockSpec((C_in, C_out), lambda i: (0, 0)),    # W^T,  resident
            x_spec,                                           # x tile (natural layout)
        ],
        out_specs=pl.BlockSpec((bt_tile, N, C_out), lambda i: (i, 0, 0)),
        compiler_params=pltpu.CompilerParams(
            dimension_semantics=("parallel",),                # megacore-shardable
            vmem_limit_bytes=vmem_limit_bytes),
        cost_estimate=cost,
    )(abar_c, w_c, x_c)

    # Free reshape back to the module's output layout.
    return out_r.reshape(B, T, N, C_out)


# ---------------------------------------------------------------------------
# Self-test
# ---------------------------------------------------------------------------

if __name__ == "__main__":
    # Small, deterministic example shapes (note: at these demo sizes the MXU is
    # badly shaped — K=N=16 / K=C_in=4 — and the kernel is pure bandwidth; the
    # layout/DMA-level decisions above are what matter, not MXU tweaks).
    B, T, N, C_in, C_out = 2, 8, 16, 4, 32

    key = jax.random.PRNGKey(0)
    k_x, k_a, k_w = jax.random.split(key, 3)

    x = jax.random.normal(k_x, (B, T, N, C_in), dtype=jnp.float32)

    # Deterministic synthetic adjacency: symmetric 0/1 matrix, zero diagonal.
    a_raw = jax.random.uniform(k_a, (N, N), dtype=jnp.float32)
    A = (((a_raw + a_raw.T) * 0.5) > 0.5).astype(jnp.float32)
    A = A * (1.0 - jnp.eye(N, dtype=jnp.float32))
    Abar = normalize_adj(A)

    # nn.Linear(in_channels, out_channels, bias=False) weight: (C_out, C_in)
    weight = jax.random.normal(k_w, (C_out, C_in), dtype=jnp.float32) * 0.1

    # Reference: plain-JAX einsum, same math as the PyTorch module.
    ref = jnp.einsum('ij,btjc->btic', Abar, x) @ weight.T

    # f32 path: strict tolerance.
    out = jax.block_until_ready(graph_conv(x, Abar, weight))
    assert out.shape == (B, T, N, C_out)
    assert jnp.allclose(out, ref, atol=1e-5, rtol=1e-5), "f32 mismatch vs reference"

    # bf16 MXU path (fast path on v5e/v6e/v7x): looser tolerance.
    out_bf16 = jax.block_until_ready(
        graph_conv(x, Abar, weight, mxu_dtype=jnp.bfloat16))
    assert out_bf16.shape == (B, T, N, C_out)
    assert jnp.allclose(out_bf16, ref, atol=5e-2, rtol=5e-2), \
        "bf16 mismatch vs reference"

    print("KERNEL_OK")
</pallas_src>

<mosaic_0001>
module attributes {stable_mosaic.version = 11 : i64} {
  func.func @_graphconv_kernel(%arg0: i32, %arg1: memref<16x16xf32, #tpu.memory_space<vmem>>, %arg2: memref<4x32xf32, #tpu.memory_space<vmem>>, %arg3: memref<8x16x4xf32, #tpu.memory_space<vmem>>, %arg4: memref<8x16x32xf32, #tpu.memory_space<vmem>>) attributes {dimension_semantics = [#tpu.dimension_semantics<parallel>], iteration_bounds = array<i64: 2>, scalar_prefetch = 0 : i64, scratch_operands = 0 : i64, tpu.core_type = #tpu.core_type<tc>, window_params = [{pipeline_mode = #tpu.pipeline_mode<synchronous>, transform_indices = @transform_0, window_bounds = array<i64: 16, 16>}, {pipeline_mode = #tpu.pipeline_mode<synchronous>, transform_indices = @transform_1, window_bounds = array<i64: 4, 32>}, {transform_indices = @transform_2, window_bounds = array<i64: 8, 16, 4>}, {transform_indices = @transform_3, window_bounds = array<i64: 8, 16, 32>}]} {
    %c0 = arith.constant 0 : index
    %c0_0 = arith.constant 0 : index
    %0 = vector.load %arg1[%c0, %c0_0] : memref<16x16xf32, #tpu.memory_space<vmem>>, vector<16x16xf32>
    %c0_1 = arith.constant 0 : index
    %c0_2 = arith.constant 0 : index
    %1 = vector.load %arg2[%c0_1, %c0_2] : memref<4x32xf32, #tpu.memory_space<vmem>>, vector<4x32xf32>
    %c0_i32 = arith.constant 0 : i32
    %2 = arith.index_cast %c0_i32 : i32 to index
    %c0_3 = arith.constant 0 : index
    %c0_4 = arith.constant 0 : index
    %3 = vector.load %arg3[%2, %c0_3, %c0_4] : memref<8x16x4xf32, #tpu.memory_space<vmem>>, vector<1x16x4xf32>
    %4 = vector.shape_cast %3 : vector<1x16x4xf32> to vector<16x4xf32>
    %cst = arith.constant dense<0.000000e+00> : vector<16x4xf32>
    %5 = tpu.matmul %0, %4, %cst {dimension_numbers = #tpu.dot_dimension_numbers<[1], [0], [0], [1], [0, 0, 1, 1], [], []>} : vector<16x16xf32>, vector<16x4xf32>, vector<16x4xf32> -> vector<16x4xf32>
    %cst_5 = arith.constant dense<0.000000e+00> : vector<16x32xf32>
    %6 = tpu.matmul %5, %1, %cst_5 {dimension_numbers = #tpu.dot_dimension_numbers<[1], [0], [0], [1], [0, 0, 1, 1], [], []>} : vector<16x4xf32>, vector<4x32xf32>, vector<16x32xf32> -> vector<16x32xf32>
    %7 = arith.index_cast %c0_i32 : i32 to index
    %c0_6 = arith.constant 0 : index
    %c0_7 = arith.constant 0 : index
    %8 = vector.load %arg4[%7, %c0_6, %c0_7] : memref<8x16x32xf32, #tpu.memory_space<vmem>>, vector<1x16x32xf32>
    %9 = vector.shape_cast %8 : vector<1x16x32xf32> to vector<16x32xf32>
    %10 = vector.shape_cast %6 : vector<16x32xf32> to vector<1x16x32xf32>
    tpu.vector_store %arg4[%7, %c0_6, %c0_7], %10 {strides = array<i32>} : memref<8x16x32xf32, #tpu.memory_space<vmem>>, vector<1x16x32xf32>,
    %c1_i32 = arith.constant 1 : i32
    %11 = arith.index_cast %c1_i32 : i32 to index
    %c0_8 = arith.constant 0 : index
    %c0_9 = arith.constant 0 : index
    %12 = vector.load %arg3[%11, %c0_8, %c0_9] : memref<8x16x4xf32, #tpu.memory_space<vmem>>, vector<1x16x4xf32>
    %13 = vector.shape_cast %12 : vector<1x16x4xf32> to vector<16x4xf32>
    %cst_10 = arith.constant dense<0.000000e+00> : vector<16x4xf32>
    %14 = tpu.matmul %0, %13, %cst_10 {dimension_numbers = #tpu.dot_dimension_numbers<[1], [0], [0], [1], [0, 0, 1, 1], [], []>} : vector<16x16xf32>, vector<16x4xf32>, vector<16x4xf32> -> vector<16x4xf32>
    %cst_11 = arith.constant dense<0.000000e+00> : vector<16x32xf32>
    %15 = tpu.matmul %14, %1, %cst_11 {dimension_numbers = #tpu.dot_dimension_numbers<[1], [0], [0], [1], [0, 0, 1, 1], [], []>} : vector<16x4xf32>, vector<4x32xf32>, vector<16x32xf32> -> vector<16x32xf32>
    %16 = arith.index_cast %c1_i32 : i32 to index
    %c0_12 = arith.constant 0 : index
    %c0_13 = arith.constant 0 : index
    %17 = vector.load %arg4[%16, %c0_12, %c0_13] : memref<8x16x32xf32, #tpu.memory_space<vmem>>, vector<1x16x32xf32>
    %18 = vector.shape_cast %17 : vector<1x16x32xf32> to vector<16x32xf32>
    %19 = vector.shape_cast %15 : vector<16x32xf32> to vector<1x16x32xf32>
    tpu.vector_store %arg4[%16, %c0_12, %c0_13], %19 {strides = array<i32>} : memref<8x16x32xf32, #tpu.memory_space<vmem>>, vector<1x16x32xf32>,
    %c2_i32 = arith.constant 2 : i32
    %20 = arith.index_cast %c2_i32 : i32 to index
    %c0_14 = arith.constant 0 : index
    %c0_15 = arith.constant 0 : index
    %21 = vector.load %arg3[%20, %c0_14, %c0_15] : memref<8x16x4xf32, #tpu.memory_space<vmem>>, vector<1x16x4xf32>
    %22 = vector.shape_cast %21 : vector<1x16x4xf32> to vector<16x4xf32>
    %cst_16 = arith.constant dense<0.000000e+00> : vector<16x4xf32>
    %23 = tpu.matmul %0, %22, %cst_16 {dimension_numbers = #tpu.dot_dimension_numbers<[1], [0], [0], [1], [0, 0, 1, 1], [], []>} : vector<16x16xf32>, vector<16x4xf32>, vector<16x4xf32> -> vector<16x4xf32>
    %cst_17 = arith.constant dense<0.000000e+00> : vector<16x32xf32>
    %24 = tpu.matmul %23, %1, %cst_17 {dimension_numbers = #tpu.dot_dimension_numbers<[1], [0], [0], [1], [0, 0, 1, 1], [], []>} : vector<16x4xf32>, vector<4x32xf32>, vector<16x32xf32> -> vector<16x32xf32>
    %25 = arith.index_cast %c2_i32 : i32 to index
    %c0_18 = arith.constant 0 : index
    %c0_19 = arith.constant 0 : index
    %26 = vector.load %arg4[%25, %c0_18, %c0_19] : memref<8x16x32xf32, #tpu.memory_space<vmem>>, vector<1x16x32xf32>
    %27 = vector.shape_cast %26 : vector<1x16x32xf32> to vector<16x32xf32>
    %28 = vector.shape_cast %24 : vector<16x32xf32> to vector<1x16x32xf32>
    tpu.vector_store %arg4[%25, %c0_18, %c0_19], %28 {strides = array<i32>} : memref<8x16x32xf32, #tpu.memory_space<vmem>>, vector<1x16x32xf32>,
    %c3_i32 = arith.constant 3 : i32
    %29 = arith.index_cast %c3_i32 : i32 to index
    %c0_20 = arith.constant 0 : index
    %c0_21 = arith.constant 0 : index
    %30 = vector.load %arg3[%29, %c0_20, %c0_21] : memref<8x16x4xf32, #tpu.memory_space<vmem>>, vector<1x16x4xf32>
    %31 = vector.shape_cast %30 : vector<1x16x4xf32> to vector<16x4xf32>
    %cst_22 = arith.constant dense<0.000000e+00> : vector<16x4xf32>
    %32 = tpu.matmul %0, %31, %cst_22 {dimension_numbers = #tpu.dot_dimension_numbers<[1], [0], [0], [1], [0, 0, 1, 1], [], []>} : vector<16x16xf32>, vector<16x4xf32>, vector<16x4xf32> -> vector<16x4xf32>
    %cst_23 = arith.constant dense<0.000000e+00> : vector<16x32xf32>
    %33 = tpu.matmul %32, %1, %cst_23 {dimension_numbers = #tpu.dot_dimension_numbers<[1], [0], [0], [1], [0, 0, 1, 1], [], []>} : vector<16x4xf32>, vector<4x32xf32>, vector<16x32xf32> -> vector<16x32xf32>
    %34 = arith.index_cast %c3_i32 : i32 to index
    %c0_24 = arith.constant 0 : index
    %c0_25 = arith.constant 0 : index
    %35 = vector.load %arg4[%34, %c0_24, %c0_25] : memref<8x16x32xf32, #tpu.memory_space<vmem>>, vector<1x16x32xf32>
    %36 = vector.shape_cast %35 : vector<1x16x32xf32> to vector<16x32xf32>
    %37 = vector.shape_cast %33 : vector<16x32xf32> to vector<1x16x32xf32>
    tpu.vector_store %arg4[%34, %c0_24, %c0_25], %37 {strides = array<i32>} : memref<8x16x32xf32, #tpu.memory_space<vmem>>, vector<1x16x32xf32>,
    %c4_i32 = arith.constant 4 : i32
    %38 = arith.index_cast %c4_i32 : i32 to index
    %c0_26 = arith.constant 0 : index
    %c0_27 = arith.constant 0 : index
    %39 = vector.load %arg3[%38, %c0_26, %c0_27] : memref<8x16x4xf32, #tpu.memory_space<vmem>>, vector<1x16x4xf32>
    %40 = vector.shape_cast %39 : vector<1x16x4xf32> to vector<16x4xf32>
    %cst_28 = arith.constant dense<0.000000e+00> : vector<16x4xf32>
    %41 = tpu.matmul %0, %40, %cst_28 {dimension_numbers = #tpu.dot_dimension_numbers<[1], [0], [0], [1], [0, 0, 1, 1], [], []>} : vector<16x16xf32>, vector<16x4xf32>, vector<16x4xf32> -> vector<16x4xf32>
    %cst_29 = arith.constant dense<0.000000e+00> : vector<16x32xf32>
    %42 = tpu.matmul %41, %1, %cst_29 {dimension_numbers = #tpu.dot_dimension_numbers<[1], [0], [0], [1], [0, 0, 1, 1], [], []>} : vector<16x4xf32>, vector<4x32xf32>, vector<16x32xf32> -> vector<16x32xf32>
    %43 = arith.index_cast %c4_i32 : i32 to index
    %c0_30 = arith.constant 0 : index
    %c0_31 = arith.constant 0 : index
    %44 = vector.load %arg4[%43, %c0_30, %c0_31] : memref<8x16x32xf32, #tpu.memory_space<vmem>>, vector<1x16x32xf32>
    %45 = vector.shape_cast %44 : vector<1x16x32xf32> to vector<16x32xf32>
    %46 = vector.shape_cast %42 : vector<16x32xf32> to vector<1x16x32xf32>
    tpu.vector_store %arg4[%43, %c0_30, %c0_31], %46 {strides = array<i32>} : memref<8x16x32xf32, #tpu.memory_space<vmem>>, vector<1x16x32xf32>,
    %c5_i32 = arith.constant 5 : i32
    %47 = arith.index_cast %c5_i32 : i32 to index
    %c0_32 = arith.constant 0 : index
    %c0_33 = arith.constant 0 : index
    %48 = vector.load %arg3[%47, %c0_32, %c0_33] : memref<8x16x4xf32, #tpu.memory_space<vmem>>, vector<1x16x4xf32>
    %49 = vector.shape_cast %48 : vector<1x16x4xf32> to vector<16x4xf32>
    %cst_34 = arith.constant dense<0.000000e+00> : vector<16x4xf32>
    %50 = tpu.matmul %0, %49, %cst_34 {dimension_numbers = #tpu.dot_dimension_numbers<[1], [0], [0], [1], [0, 0, 1, 1], [], []>} : vector<16x16xf32>, vector<16x4xf32>, vector<16x4xf32> -> vector<16x4xf32>
    %cst_35 = arith.constant dense<0.000000e+00> : vector<16x32xf32>
    %51 = tpu.matmul %50, %1, %cst_35 {dimension_numbers = #tpu.dot_dimension_numbers<[1], [0], [0], [1], [0, 0, 1, 1], [], []>} : vector<16x4xf32>, vector<4x32xf32>, vector<16x32xf32> -> vector<16x32xf32>
    %52 = arith.index_cast %c5_i32 : i32 to index
    %c0_36 = arith.constant 0 : index
    %c0_37 = arith.constant 0 : index
    %53 = vector.load %arg4[%52, %c0_36, %c0_37] : memref<8x16x32xf32, #tpu.memory_space<vmem>>, vector<1x16x32xf32>
    %54 = vector.shape_cast %53 : vector<1x16x32xf32> to vector<16x32xf32>
    %55 = vector.shape_cast %51 : vector<16x32xf32> to vector<1x16x32xf32>
    tpu.vector_store %arg4[%52, %c0_36, %c0_37], %55 {strides = array<i32>} : memref<8x16x32xf32, #tpu.memory_space<vmem>>, vector<1x16x32xf32>,
    %c6_i32 = arith.constant 6 : i32
    %56 = arith.index_cast %c6_i32 : i32 to index
    %c0_38 = arith.constant 0 : index
    %c0_39 = arith.constant 0 : index
    %57 = vector.load %arg3[%56, %c0_38, %c0_39] : memref<8x16x4xf32, #tpu.memory_space<vmem>>, vector<1x16x4xf32>
    %58 = vector.shape_cast %57 : vector<1x16x4xf32> to vector<16x4xf32>
    %cst_40 = arith.constant dense<0.000000e+00> : vector<16x4xf32>
    %59 = tpu.matmul %0, %58, %cst_40 {dimension_numbers = #tpu.dot_dimension_numbers<[1], [0], [0], [1], [0, 0, 1, 1], [], []>} : vector<16x16xf32>, vector<16x4xf32>, vector<16x4xf32> -> vector<16x4xf32>
    %cst_41 = arith.constant dense<0.000000e+00> : vector<16x32xf32>
    %60 = tpu.matmul %59, %1, %cst_41 {dimension_numbers = #tpu.dot_dimension_numbers<[1], [0], [0], [1], [0, 0, 1, 1], [], []>} : vector<16x4xf32>, vector<4x32xf32>, vector<16x32xf32> -> vector<16x32xf32>
    %61 = arith.index_cast %c6_i32 : i32 to index
    %c0_42 = arith.constant 0 : index
    %c0_43 = arith.constant 0 : index
    %62 = vector.load %arg4[%61, %c0_42, %c0_43] : memref<8x16x32xf32, #tpu.memory_space<vmem>>, vector<1x16x32xf32>
    %63 = vector.shape_cast %62 : vector<1x16x32xf32> to vector<16x32xf32>
    %64 = vector.shape_cast %60 : vector<16x32xf32> to vector<1x16x32xf32>
    tpu.vector_store %arg4[%61, %c0_42, %c0_43], %64 {strides = array<i32>} : memref<8x16x32xf32, #tpu.memory_space<vmem>>, vector<1x16x32xf32>,
    %c7_i32 = arith.constant 7 : i32
    %65 = arith.index_cast %c7_i32 : i32 to index
    %c0_44 = arith.constant 0 : index
    %c0_45 = arith.constant 0 : index
    %66 = vector.load %arg3[%65, %c0_44, %c0_45] : memref<8x16x4xf32, #tpu.memory_space<vmem>>, vector<1x16x4xf32>
    %67 = vector.shape_cast %66 : vector<1x16x4xf32> to vector<16x4xf32>
    %cst_46 = arith.constant dense<0.000000e+00> : vector<16x4xf32>
    %68 = tpu.matmul %0, %67, %cst_46 {dimension_numbers = #tpu.dot_dimension_numbers<[1], [0], [0], [1], [0, 0, 1, 1], [], []>} : vector<16x16xf32>, vector<16x4xf32>, vector<16x4xf32> -> vector<16x4xf32>
    %cst_47 = arith.constant dense<0.000000e+00> : vector<16x32xf32>
    %69 = tpu.matmul %68, %1, %cst_47 {dimension_numbers = #tpu.dot_dimension_numbers<[1], [0], [0], [1], [0, 0, 1, 1], [], []>} : vector<16x4xf32>, vector<4x32xf32>, vector<16x32xf32> -> vector<16x32xf32>
    %70 = arith.index_cast %c7_i32 : i32 to index
    %c0_48 = arith.constant 0 : index
    %c0_49 = arith.constant 0 : index
    %71 = vector.load %arg4[%70, %c0_48, %c0_49] : memref<8x16x32xf32, #tpu.memory_space<vmem>>, vector<1x16x32xf32>
    %72 = vector.shape_cast %71 : vector<1x16x32xf32> to vector<16x32xf32>
    %73 = vector.shape_cast %69 : vector<16x32xf32> to vector<1x16x32xf32>
    tpu.vector_store %arg4[%70, %c0_48, %c0_49], %73 {strides = array<i32>} : memref<8x16x32xf32, #tpu.memory_space<vmem>>, vector<1x16x32xf32>,
    %c8_i32 = arith.constant 8 : i32
    return
  }
  func.func @transform_0(%arg0: i32) -> (i32, i32) {
    %c0_i32 = arith.constant 0 : i32
    %c0_i32_0 = arith.constant 0 : i32
    %c0_i32_1 = arith.constant 0 : i32
    return %c0_i32, %c0_i32_0 : i32, i32
  }
  func.func @transform_1(%arg0: i32) -> (i32, i32) {
    %c0_i32 = arith.constant 0 : i32
    %c0_i32_0 = arith.constant 0 : i32
    %c0_i32_1 = arith.constant 0 : i32
    return %c0_i32, %c0_i32_0 : i32, i32
  }
  func.func @transform_2(%arg0: i32) -> (i32, i32, i32) {
    %c0_i32 = arith.constant 0 : i32
    %c0_i32_0 = arith.constant 0 : i32
    %c0_i32_1 = arith.constant 0 : i32
    return %arg0, %c0_i32, %c0_i32_0 : i32, i32, i32
  }
  func.func @transform_3(%arg0: i32) -> (i32, i32, i32) {
    %c0_i32 = arith.constant 0 : i32
    %c0_i32_0 = arith.constant 0 : i32
    %c0_i32_1 = arith.constant 0 : i32
    return %arg0, %c0_i32, %c0_i32_0 : i32, i32, i32
  }
}

</mosaic_0001>

<llo_original>
// kernel: tpu_custom_call.1
$region0: #{tpu_custom_call.1}
  #allocation0 [shape = 'u32[]', space=smem, size = 0x4, offset = 0x4, fixed_abs, tag = 'smem constant byte address 0x4 - core index']
  #allocation1 [shape = 'u32[144,128]{1,0:T(1,128)}', space=vmem, size = 0x12000, scoped, tag = 'internal scratch']
  %s0 = inlined_call_operand.vmem [shape: f32[16,16], index: 0, kind: input, shape index: {}]
  %s1 = inlined_call_operand.vmem [shape: f32[4,32], index: 1, kind: input, shape index: {}]
  %s2 = inlined_call_operand.vmem [shape: f32[16,16,4], index: 2, kind: input, shape index: {}]
  %s3 = inlined_call_operand.hbm [shape: f32[16,16,32], index: 3, kind: output, shape index: {}]
  %s4 = sld [smem:[#allocation0]]
  $region45: #{tpu_custom_call.1} parent=0
    _
  %s6 = ssub.s32 1, %s4
  %s7 = scalar_select 0, %s6, %s4
  $region1: #{tpu_custom_call.1} parent=0
    #allocation2 [shape = 'u8[131072]{0}', space=vmem, size = 0x20000, scoped, tag = 'output window, operand 0']
    #allocation3 [shape = 's32[2]{0}', space=sflag, size = 0x8, scoped, tag = 'scoped memory for tpu_custom_call.1']
    %8 = vsyncpa [#allocation3], 0
    %s9 = scalar_lea.sflag [#allocation3], 1
    %10 = vsyncpa %s9, 0
    loop: start=0, step=1, limit=4
    $region2: #{tpu_custom_call.1} parent=1 // loop_pre_header
      _
    $region3: #{tpu_custom_call.1} parent=1 // loop_header
      %s12 = sphi 0, %s16
      %p13 = scmp.ge.s32.totalorder %s12, 4
      %s20 = sphi 0, %s20
      %s22 = sphi 0, %s20
      %s23 = sphi 0, %s22
      %s37 = sphi 0, %s23
      %s41 = sphi 0, %s41
      %s43 = sphi 0, %s41
      %s44 = sphi 0, %s43
      %s58 = sphi 0, %s44
      %s64 = sphi 0, %s66
      %s67 = sphi 0, %s64
      %s68 = sphi 0, %s67
      %s84 = sphi 0, %s68
      %s90 = sphi 0, %s92
      %s93 = sphi 0, %s90
      %s94 = sphi 0, %s93
      %s110 = sphi 0, %s94
    $region4: #{tpu_custom_call.1} parent=1 // loop_header_branch
      %15 = sbr.rel (%p13) target = $region8
    $region5: #{tpu_custom_call.1} parent=1 // loop_body
      %s17 = ssub.s32 %s12, 1
      %s18 = ssub.s32 %s12, 2
      %s19 = sadd.s32 %s12, 1
      %s21 = sadd.s32 %s20, 1
      %p24 = scmp.eq.s32.totalorder %s12, 1
      %p25 = scmp.ne.s32.totalorder %s20, %s22
      %p26 = scmp.eq.s32.totalorder %s12, 0
      %p27 = por %p25, %p26
      %p28 = scmp.ne.s32.totalorder %s20, %s22
      %p29 = scmp.eq.s32.totalorder %s17, 1
      %p30 = por %p28, %p29
      %p31 = scmp.ne.s32.totalorder %s22, %s23
      %p32 = scmp.eq.s32.totalorder %s17, 0
      %p33 = por %p31, %p32
      %p34 = scmp.ne.s32.totalorder %s22, %s23
      %p35 = scmp.eq.s32.totalorder %s18, 1
      %p36 = por %p34, %p35
      %p38 = scmp.ne.s32.totalorder %s23, %s37
      %p39 = scmp.eq.s32.totalorder %s18, 0
      %p40 = por %p38, %p39
      %s42 = sadd.s32 %s41, 1
      %p45 = scmp.eq.s32.totalorder %s12, 1
      %p46 = scmp.ne.s32.totalorder %s41, %s43
      %p47 = scmp.eq.s32.totalorder %s12, 0
      %p48 = por %p46, %p47
      %p49 = scmp.ne.s32.totalorder %s41, %s43
      %p50 = scmp.eq.s32.totalorder %s17, 1
      %p51 = por %p49, %p50
      %p52 = scmp.ne.s32.totalorder %s43, %s44
      %p53 = scmp.eq.s32.totalorder %s17, 0
      %p54 = por %p52, %p53
      %p55 = scmp.ne.s32.totalorder %s43, %s44
      %p56 = scmp.eq.s32.totalorder %s18, 1
      %p57 = por %p55, %p56
      %p59 = scmp.ne.s32.totalorder %s44, %s58
      %p60 = scmp.eq.s32.totalorder %s18, 0
      %p61 = por %p59, %p60
      %s62 = ssub.s32 %s12, %s19
      %p63 = scmp.eq.s32.totalorder %s62, 0
      %s65 = sadd.s32 %s64, 1
      %s66 = scalar_select %p63, %s64, %s65
      %p69 = pneg %p63
      %p70 = scmp.eq.s32.totalorder %s12, 1
      %p71 = por %p69, %p70
      %p72 = scmp.ne.s32.totalorder %s64, %s67
      %p73 = scmp.eq.s32.totalorder %s12, 0
      %p74 = por %p72, %p73
      %p75 = scmp.ne.s32.totalorder %s64, %s67
      %p76 = scmp.eq.s32.totalorder %s17, 1
      %p77 = por %p75, %p76
      %p78 = scmp.ne.s32.totalorder %s67, %s68
      %p79 = scmp.eq.s32.totalorder %s17, 0
      %p80 = por %p78, %p79
      %p81 = scmp.ne.s32.totalorder %s67, %s68
      %p82 = scmp.eq.s32.totalorder %s18, 1
      %p83 = por %p81, %p82
      %p85 = scmp.ne.s32.totalorder %s68, %s84
      %p86 = scmp.eq.s32.totalorder %s18, 0
      %p87 = por %p85, %p86
      %s88 = ssub.s32 %s12, %s19
      %p89 = scmp.eq.s32.totalorder %s88, 0
      %s91 = sadd.s32 %s90, 1
      %s92 = scalar_select %p89, %s90, %s91
      %p95 = pneg %p89
      %p96 = scmp.eq.s32.totalorder %s12, 1
      %p97 = por %p95, %p96
      %p98 = scmp.ne.s32.totalorder %s90, %s93
      %p99 = scmp.eq.s32.totalorder %s12, 0
      %p100 = por %p98, %p99
      %p101 = scmp.ne.s32.totalorder %s90, %s93
      %p102 = scmp.eq.s32.totalorder %s17, 1
      %p103 = por %p101, %p102
      %p104 = scmp.ne.s32.totalorder %s93, %s94
      %p105 = scmp.eq.s32.totalorder %s17, 0
      %p106 = por %p104, %p105
      %p107 = scmp.ne.s32.totalorder %s93, %s94
      %p108 = scmp.eq.s32.totalorder %s18, 1
      %p109 = por %p107, %p108
      %p111 = scmp.ne.s32.totalorder %s94, %s110
      %p112 = scmp.eq.s32.totalorder %s18, 0
      %p113 = por %p111, %p112
      %p114 = scmp.le.s32.totalorder 1, %s12
      %p115 = scmp.lt.s32.totalorder %s12, 3
      %p116 = pnand %p114, %p115
      %p117 = pneg %p116
      // Predicated region
      $region9: #{tpu_custom_call.1} parent=5 // pred_check
        _
      $region10: #{tpu_custom_call.1} parent=5 // pred_check_branch
        %119 = sbr.rel (%p116) target = $region12
      $region11: #{tpu_custom_call.1} parent=5 // pred_region
        %s120 = ssub.s32 %s12, 1
        // Predicated region
        $region13: #{tpu_custom_call.1} parent=11 // pred_check
          %p121 = pneg %p33
        $region14: #{tpu_custom_call.1} parent=11 // pred_check_branch
          %123 = sbr.rel (%p121) target = $region16
        $region15: #{tpu_custom_call.1} parent=11 // pred_region
          _
        $region16: #{tpu_custom_call.1} parent=11 // pred_fallthru
          _
        // Predicated region
        $region17: #{tpu_custom_call.1} parent=11 // pred_check
          %p124 = pneg %p54
        $region18: #{tpu_custom_call.1} parent=11 // pred_check_branch
          %126 = sbr.rel (%p124) target = $region20
        $region19: #{tpu_custom_call.1} parent=11 // pred_region
          _
        $region20: #{tpu_custom_call.1} parent=11 // pred_fallthru
          _
      $region12: #{tpu_custom_call.1} parent=5 // pred_fallthru
        _
      %p127 = scmp.lt.s32.totalorder %s12, 2
      // Predicated region
      $region21: #{tpu_custom_call.1} parent=5 // pred_check
        %p128 = pneg %p127
      $region22: #{tpu_custom_call.1} parent=5 // pred_check_branch
        %130 = sbr.rel (%p128) target = $region24
      $region23: #{tpu_custom_call.1} parent=5 // pred_region
        // Predicated region
        $region25: #{tpu_custom_call.1} parent=23 // pred_check
          %p131 = pneg %p74
        $region26: #{tpu_custom_call.1} parent=23 // pred_check_branch
          %133 = sbr.rel (%p131) target = $region28
        $region27: #{tpu_custom_call.1} parent=23 // pred_region
          %s134 = smul.u32 8, %s12
          %p135 = scmp.lt.s32.totalorder %s134, 15
          %s136 = scalar_select %p135, %s134, 15
          %s137 = smul.addr %s136, 2
          %s138 = smul.addr %s137, 8
          %s139 = scalar_lea.vmem %s2, %s138
          %s140 = smul.u32 8, %s12
        $region28: #{tpu_custom_call.1} parent=23 // pred_fallthru
          _
      $region24: #{tpu_custom_call.1} parent=5 // pred_fallthru
        _
      %p141 = scmp.le.s32.totalorder 1, %s12
      %p142 = scmp.lt.s32.totalorder %s12, 3
      %p143 = pnand %p141, %p142
      %p144 = pneg %p143
      // Predicated region
      $region29: #{tpu_custom_call.1} parent=5 // pred_check
        _
      $region30: #{tpu_custom_call.1} parent=5 // pred_check_branch
        %146 = sbr.rel (%p143) target = $region32
      $region31: #{tpu_custom_call.1} parent=5 // pred_region
        %s147 = ssub.s32 %s12, 1
        %p148 = pneg %p33
        %p149 = pneg %p30
        %p150 = pneg %p54
        %p151 = pneg %p51
        %s152 = smul.u32 8, %s17
        %p153 = scmp.lt.s32.totalorder %s152, 15
        %s154 = scalar_select %p153, %s152, 15
        %s155 = smul.addr %s154, 2
        %s156 = smul.addr %s155, 8
        %s157 = scalar_lea.vmem %s2, %s156
        %p158 = pneg %p80
        %p159 = pneg %p77
        %p160 = pneg %p106
        %p161 = pneg %p103
        %s162 = sand.u32 %s93, 1
        %s163 = scalar_lea.sflag [#allocation3], %s162
        %s164 = sand.u32 %s93, 1
        %s165 = smul.addr %s164, 128
        %s166 = scalar_lea.vmem [#allocation2], %s165
        %s167 = smul.u32 8, %s17
        %p168 = scmp.lt.s32.totalorder %s167, 15
        %s169 = scalar_select %p168, %s167, 15
        %s170 = smul.addr %s169, 2
        %s171 = smul.addr %s170, 8
        %s172 = scalar_lea.vmem %s2, %s171
        %s173 = smul.u32 8, %s17
        %s174 = smul.u32 8, %s17
        %v175 = vld [vmem:[%s0] sm:$0xff]
        %v176 = vld [vmem:[%s0 + $0x8] sm:$0xff]
        %v177 = vld [vmem:[%s1] sm:$0xf]
        %v178 = vld [vmem:[%s172] sm:$0xff]
        %v179 = vld [vmem:[%s172 + $0x8] sm:$0xff]
        %vm180 = vcmask 130048
        %v182 = vsel %vm180, %v175, 0
        %v185 = vsel %vm180, %v176, 0
        %187 = vmatprep.subr.mxu0 0.0
        %188 = vmatpush1.msra.mxu0 %v178
        %189 = vmatprep.subr.mxu0 0.0
        %190 = vmatpush1.msra.mxu0 %v179
        %191 = vmatprep.subr.mxu0 0.0
        %192 = vmatpush1.msra.mxu0 0.0
        %193 = vmatprep.subr.mxu0 0.0
        %194 = vmatpush1.msra.mxu0 0.0
        %195 = vmatprep.subr.mxu0 0.0
        %196 = vmatpush1.msra.mxu0 0.0
        %197 = vmatprep.subr.mxu0 0.0
        %198 = vmatpush1.msra.mxu0 0.0
        %199 = vmatprep.subr.mxu0 0.0
        %200 = vmatpush1.msra.mxu0 0.0
        %201 = vmatprep.subr.mxu0 0.0
        %202 = vmatpush1.msra.mxu0 0.0
        %203 = vmatprep.subr.mxu0 0.0
        %204 = vmatpush1.msra.mxu0 0.0
        %205 = vmatprep.subr.mxu0 0.0
        %206 = vmatpush1.msra.mxu0 0.0
        %207 = vmatprep.subr.mxu0 0.0
        %208 = vmatpush1.msra.mxu0 0.0
        %209 = vmatprep.subr.mxu0 0.0
        %210 = vmatpush1.msra.mxu0 0.0
        %211 = vmatprep.subr.mxu0 0.0
        %212 = vmatpush1.msra.mxu0 0.0
        %213 = vmatprep.subr.mxu0 0.0
        %214 = vmatpush1.msra.mxu0 0.0
        %215 = vmatprep.subr.mxu0 0.0
        %216 = vmatpush1.msra.mxu0 0.0
        %217 = vmatprep.subr.mxu0 0.0
        %218 = vmatpush1.msra.mxu0 0.0
        %219 = vmatprep.subr.mxu0 0.0
        %220 = vmatpush1.msra.mxu0 0.0
        %221 = vmatprep.subr.mxu0 0.0
        %222 = vmatpush1.msra.mxu0 0.0
        %223 = vmatprep.subr.mxu0 0.0
        %224 = vmatpush1.msra.mxu0 0.0
        %225 = vmatprep.subr.mxu0 0.0
        %226 = vmatpush1.msra.mxu0 0.0
        %227 = vmatprep.subr.mxu0 0.0
        %228 = vmatpush1.msra.mxu0 0.0
        %229 = vmatprep.subr.mxu0 0.0
        %230 = vmatpush1.msra.mxu0 0.0
        %231 = vmatprep.subr.mxu0 0.0
        %232 = vmatpush1.msra.mxu0 0.0
        %233 = vmatprep.subr.mxu0 0.0
        %234 = vmatpush1.msra.mxu0 0.0
        %235 = vmatprep.subr.mxu0 0.0
        %236 = vmatpush1.msra.mxu0 0.0
        %237 = vmatprep.subr.mxu0 0.0
        %238 = vmatpush1.msra.mxu0 0.0
        %239 = vmatprep.subr.mxu0 0.0
        %240 = vmatpush1.msra.mxu0 0.0
        %241 = vmatprep.subr.mxu0 0.0
        %242 = vmatpush1.msra.mxu0 0.0
        %243 = vmatprep.subr.mxu0 0.0
        %244 = vmatpush1.msra.mxu0 0.0
        %245 = vmatprep.subr.mxu0 0.0
        %246 = vmatpush1.msra.mxu0 0.0
        %247 = vmatprep.subr.mxu0 0.0
        %248 = vmatpush1.msra.mxu0 0.0
        %249 = vmatprep.subr.mxu0 0.0
        %250 = vmatpush1.msra.mxu0 0.0
        %251 = vmatprep.mubr.f32.mxu0 0.0
        %252 = vmatmul.mubr.f32.gmra.mrb[0].mxu0 %v182
        %v253 = vpop.f32.mrb[0].mxu0
        %v254 = vadd.f32 0.0, %v253
        %v255 = vpop.f32.mrb[0].mxu0
        %256 = vmatprep.mubr.f32.mxu0 0.0
        %257 = vmatmul.mubr.f32.gmra.mrb[0].mxu0 %v185
        %v258 = vpop.f32.mrb[0].mxu0
        %v259 = vadd.f32 0.0, %v258
        %v260 = vpop.f32.mrb[0].mxu0
        %261 = vdwg.mxu0
        %vm262 = vcmask 31744
        %v264 = vsel %vm262, %v254, 0
        %v267 = vsel %vm262, %v259, 0
        %vm269 = vcmask 1043456
        %v271 = vsel %vm269, %v177, 0
        %273 = vmatprep.subr.mxu0 0.0
        %274 = vmatpush1.msra.mxu0 %v271
        %275 = vmatprep.subr.mxu0 0.0
        %276 = vmatpush1.msra.mxu0 0.0
        %277 = vmatprep.subr.mxu0 0.0
        %278 = vmatpush1.msra.mxu0 0.0
        %279 = vmatprep.subr.mxu0 0.0
        %280 = vmatpush1.msra.mxu0 0.0
        %281 = vmatprep.subr.mxu0 0.0
        %282 = vmatpush1.msra.mxu0 0.0
        %283 = vmatprep.subr.mxu0 0.0
        %284 = vmatpush1.msra.mxu0 0.0
        %285 = vmatprep.subr.mxu0 0.0
        %286 = vmatpush1.msra.mxu0 0.0
        %287 = vmatprep.subr.mxu0 0.0
        %288 = vmatpush1.msra.mxu0 0.0
        %289 = vmatprep.subr.mxu0 0.0
        %290 = vmatpush1.msra.mxu0 0.0
        %291 = vmatprep.subr.mxu0 0.0
        %292 = vmatpush1.msra.mxu0 0.0
        %293 = vmatprep.subr.mxu0 0.0
        %294 = vmatpush1.msra.mxu0 0.0
        %295 = vmatprep.subr.mxu0 0.0
        %296 = vmatpush1.msra.mxu0 0.0
        %297 = vmatprep.subr.mxu0 0.0
        %298 = vmatpush1.msra.mxu0 0.0
        %299 = vmatprep.subr.mxu0 0.0
        %300 = vmatpush1.msra.mxu0 0.0
        %301 = vmatprep.subr.mxu0 0.0
        %302 = vmatpush1.msra.mxu0 0.0
        %303 = vmatprep.subr.mxu0 0.0
        %304 = vmatpush1.msra.mxu0 0.0
        %305 = vmatprep.subr.mxu0 0.0
        %306 = vmatpush1.msra.mxu0 0.0
        %307 = vmatprep.subr.mxu0 0.0
        %308 = vmatpush1.msra.mxu0 0.0
        %309 = vmatprep.subr.mxu0 0.0
        %310 = vmatpush1.msra.mxu0 0.0
        %311 = vmatprep.subr.mxu0 0.0
        %312 = vmatpush1.msra.mxu0 0.0
        %313 = vmatprep.subr.mxu0 0.0
        %314 = vmatpush1.msra.mxu0 0.0
        %315 = vmatprep.subr.mxu0 0.0
        %316 = vmatpush1.msra.mxu0 0.0
        %317 = vmatprep.subr.mxu0 0.0
        %318 = vmatpush1.msra.mxu0 0.0
        %319 = vmatprep.subr.mxu0 0.0
        %320 = vmatpush1.msra.mxu0 0.0
        %321 = vmatprep.subr.mxu0 0.0
        %322 = vmatpush1.msra.mxu0 0.0
        %323 = vmatprep.subr.mxu0 0.0
        %324 = vmatpush1.msra.mxu0 0.0
        %325 = vmatprep.subr.mxu0 0.0
        %326 = vmatpush1.msra.mxu0 0.0
        %327 = vmatprep.subr.mxu0 0.0
        %328 = vmatpush1.msra.mxu0 0.0
        %329 = vmatprep.subr.mxu0 0.0
        %330 = vmatpush1.msra.mxu0 0.0
        %331 = vmatprep.subr.mxu0 0.0
        %332 = vmatpush1.msra.mxu0 0.0
        %333 = vmatprep.subr.mxu0 0.0
        %334 = vmatpush1.msra.mxu0 0.0
        %335 = vmatprep.subr.mxu0 0.0
        %336 = vmatpush1.msra.mxu0 0.0
        %337 = vmatprep.mubr.f32.mxu0 0.0
        %338 = vmatmul.mubr.f32.gmra.mrb[0].mxu0 %v264
        %v339 = vpop.f32.mrb[0].mxu0
        %v340 = vadd.f32 0.0, %v339
        %v341 = vpop.f32.mrb[0].mxu0
        %342 = vmatprep.mubr.f32.mxu0 0.0
        %343 = vmatmul.mubr.f32.gmra.mrb[0].mxu0 %v267
        %v344 = vpop.f32.mrb[0].mxu0
        %v345 = vadd.f32 0.0, %v344
        %v346 = vpop.f32.mrb[0].mxu0
        %347 = vdwg.mxu0
        %vm348 = vcmask 261120
        %349 = vst.msk [vmem:[%s166] sm:$0xff] %vm348, %v340
        %350 = vst.msk [vmem:[%s166 + $0x8] sm:$0xff] %vm348, %v345
        %s351 = scalar_lea.vmem %s172, 16
        %v352 = vld [vmem:[%s351] sm:$0xff]
        %v353 = vld [vmem:[%s351 + $0x8] sm:$0xff]
        %354 = vmatprep.subr.mxu0 0.0
        %355 = vmatpush1.msra.mxu0 %v352
        %356 = vmatprep.subr.mxu0 0.0
        %357 = vmatpush1.msra.mxu0 %v353
        %358 = vmatprep.subr.mxu0 0.0
        %359 = vmatpush1.msra.mxu0 0.0
        %360 = vmatprep.subr.mxu0 0.0
        %361 = vmatpush1.msra.mxu0 0.0
        %362 = vmatprep.subr.mxu0 0.0
        %363 = vmatpush1.msra.mxu0 0.0
        %364 = vmatprep.subr.mxu0 0.0
        %365 = vmatpush1.msra.mxu0 0.0
        %366 = vmatprep.subr.mxu0 0.0
        %367 = vmatpush1.msra.mxu0 0.0
        %368 = vmatprep.subr.mxu0 0.0
        %369 = vmatpush1.msra.mxu0 0.0
        %370 = vmatprep.subr.mxu0 0.0
        %371 = vmatpush1.msra.mxu0 0.0
        %372 = vmatprep.subr.mxu0 0.0
        %373 = vmatpush1.msra.mxu0 0.0
        %374 = vmatprep.subr.mxu0 0.0
        %375 = vmatpush1.msra.mxu0 0.0
        %376 = vmatprep.subr.mxu0 0.0
        %377 = vmatpush1.msra.mxu0 0.0
        %378 = vmatprep.subr.mxu0 0.0
        %379 = vmatpush1.msra.mxu0 0.0
        %380 = vmatprep.subr.mxu0 0.0
        %381 = vmatpush1.msra.mxu0 0.0
        %382 = vmatprep.subr.mxu0 0.0
        %383 = vmatpush1.msra.mxu0 0.0
        %384 = vmatprep.subr.mxu0 0.0
        %385 = vmatpush1.msra.mxu0 0.0
        %386 = vmatprep.subr.mxu0 0.0
        %387 = vmatpush1.msra.mxu0 0.0
        %388 = vmatprep.subr.mxu0 0.0
        %389 = vmatpush1.msra.mxu0 0.0
        %390 = vmatprep.subr.mxu0 0.0
        %391 = vmatpush1.msra.mxu0 0.0
        %392 = vmatprep.subr.mxu0 0.0
        %393 = vmatpush1.msra.mxu0 0.0
        %394 = vmatprep.subr.mxu0 0.0
        %395 = vmatpush1.msra.mxu0 0.0
        %396 = vmatprep.subr.mxu0 0.0
        %397 = vmatpush1.msra.mxu0 0.0
        %398 = vmatprep.subr.mxu0 0.0
        %399 = vmatpush1.msra.mxu0 0.0
        %400 = vmatprep.subr.mxu0 0.0
        %401 = vmatpush1.msra.mxu0 0.0
        %402 = vmatprep.subr.mxu0 0.0
        %403 = vmatpush1.msra.mxu0 0.0
        %404 = vmatprep.subr.mxu0 0.0
        %405 = vmatpush1.msra.mxu0 0.0
        %406 = vmatprep.subr.mxu0 0.0
        %407 = vmatpush1.msra.mxu0 0.0
        %408 = vmatprep.subr.mxu0 0.0
        %409 = vmatpush1.msra.mxu0 0.0
        %410 = vmatprep.subr.mxu0 0.0
        %411 = vmatpush1.msra.mxu0 0.0
        %412 = vmatprep.subr.mxu0 0.0
        %413 = vmatpush1.msra.mxu0 0.0
        %414 = vmatprep.subr.mxu0 0.0
        %415 = vmatpush1.msra.mxu0 0.0
        %416 = vmatprep.subr.mxu0 0.0
        %417 = vmatpush1.msra.mxu0 0.0
        %418 = vmatprep.mubr.f32.mxu0 0.0
        %419 = vmatmul.mubr.f32.gmra.mrb[0].mxu0 %v182
        %v420 = vpop.f32.mrb[0].mxu0
        %v421 = vadd.f32 0.0, %v420
        %v422 = vpop.f32.mrb[0].mxu0
        %423 = vmatprep.mubr.f32.mxu0 0.0
        %424 = vmatmul.mubr.f32.gmra.mrb[0].mxu0 %v185
        %v425 = vpop.f32.mrb[0].mxu0
        %v426 = vadd.f32 0.0, %v425
        %v427 = vpop.f32.mrb[0].mxu0
        %428 = vdwg.mxu0
        %v430 = vsel %vm262, %v421, 0
        %v433 = vsel %vm262, %v426, 0
        %435 = vmatprep.subr.mxu0 0.0
        %436 = vmatpush1.msra.mxu0 %v271
        %437 = vmatprep.subr.mxu0 0.0
        %438 = vmatpush1.msra.mxu0 0.0
        %439 = vmatprep.subr.mxu0 0.0
        %440 = vmatpush1.msra.mxu0 0.0
        %441 = vmatprep.subr.mxu0 0.0
        %442 = vmatpush1.msra.mxu0 0.0
        %443 = vmatprep.subr.mxu0 0.0
        %444 = vmatpush1.msra.mxu0 0.0
        %445 = vmatprep.subr.mxu0 0.0
        %446 = vmatpush1.msra.mxu0 0.0
        %447 = vmatprep.subr.mxu0 0.0
        %448 = vmatpush1.msra.mxu0 0.0
        %449 = vmatprep.subr.mxu0 0.0
        %450 = vmatpush1.msra.mxu0 0.0
        %451 = vmatprep.subr.mxu0 0.0
        %452 = vmatpush1.msra.mxu0 0.0
        %453 = vmatprep.subr.mxu0 0.0
        %454 = vmatpush1.msra.mxu0 0.0
        %455 = vmatprep.subr.mxu0 0.0
        %456 = vmatpush1.msra.mxu0 0.0
        %457 = vmatprep.subr.mxu0 0.0
        %458 = vmatpush1.msra.mxu0 0.0
        %459 = vmatprep.subr.mxu0 0.0
        %460 = vmatpush1.msra.mxu0 0.0
        %461 = vmatprep.subr.mxu0 0.0
        %462 = vmatpush1.msra.mxu0 0.0
        %463 = vmatprep.subr.mxu0 0.0
        %464 = vmatpush1.msra.mxu0 0.0
        %465 = vmatprep.subr.mxu0 0.0
        %466 = vmatpush1.msra.mxu0 0.0
        %467 = vmatprep.subr.mxu0 0.0
        %468 = vmatpush1.msra.mxu0 0.0
        %469 = vmatprep.subr.mxu0 0.0
        %470 = vmatpush1.msra.mxu0 0.0
        %471 = vmatprep.subr.mxu0 0.0
        %472 = vmatpush1.msra.mxu0 0.0
        %473 = vmatprep.subr.mxu0 0.0
        %474 = vmatpush1.msra.mxu0 0.0
        %475 = vmatprep.subr.mxu0 0.0
        %476 = vmatpush1.msra.mxu0 0.0
        %477 = vmatprep.subr.mxu0 0.0
        %478 = vmatpush1.msra.mxu0 0.0
        %479 = vmatprep.subr.mxu0 0.0
        %480 = vmatpush1.msra.mxu0 0.0
        %481 = vmatprep.subr.mxu0 0.0
        %482 = vmatpush1.msra.mxu0 0.0
        %483 = vmatprep.subr.mxu0 0.0
        %484 = vmatpush1.msra.mxu0 0.0
        %485 = vmatprep.subr.mxu0 0.0
        %486 = vmatpush1.msra.mxu0 0.0
        %487 = vmatprep.subr.mxu0 0.0
        %488 = vmatpush1.msra.mxu0 0.0
        %489 = vmatprep.subr.mxu0 0.0
        %490 = vmatpush1.msra.mxu0 0.0
        %491 = vmatprep.subr.mxu0 0.0
        %492 = vmatpush1.msra.mxu0 0.0
        %493 = vmatprep.subr.mxu0 0.0
        %494 = vmatpush1.msra.mxu0 0.0
        %495 = vmatprep.subr.mxu0 0.0
        %496 = vmatpush1.msra.mxu0 0.0
        %497 = vmatprep.subr.mxu0 0.0
        %498 = vmatpush1.msra.mxu0 0.0
        %499 = vmatprep.mubr.f32.mxu0 0.0
        %500 = vmatmul.mubr.f32.gmra.mrb[0].mxu0 %v430
        %v501 = vpop.f32.mrb[0].mxu0
        %v502 = vadd.f32 0.0, %v501
        %v503 = vpop.f32.mrb[0].mxu0
        %504 = vmatprep.mubr.f32.mxu0 0.0
        %505 = vmatmul.mubr.f32.gmra.mrb[0].mxu0 %v433
        %v506 = vpop.f32.mrb[0].mxu0
        %v507 = vadd.f32 0.0, %v506
        %v508 = vpop.f32.mrb[0].mxu0
        %509 = vdwg.mxu0
        %s510 = scalar_lea.vmem %s166, 16 [#allocation2]
        %511 = vst.msk [vmem:[%s510] sm:$0xff] %vm348, %v502
        %512 = vst.msk [vmem:[%s510 + $0x8] sm:$0xff] %vm348, %v507
        %s513 = scalar_lea.vmem %s172, 32
        %v514 = vld [vmem:[%s513] sm:$0xff]
        %v515 = vld [vmem:[%s513 + $0x8] sm:$0xff]
        %516 = vmatprep.subr.mxu0 0.0
        %517 = vmatpush1.msra.mxu0 %v514
        %518 = vmatprep.subr.mxu0 0.0
        %519 = vmatpush1.msra.mxu0 %v515
        %520 = vmatprep.subr.mxu0 0.0
        %521 = vmatpush1.msra.mxu0 0.0
        %522 = vmatprep.subr.mxu0 0.0
        %523 = vmatpush1.msra.mxu0 0.0
        %524 = vmatprep.subr.mxu0 0.0
        %525 = vmatpush1.msra.mxu0 0.0
        %526 = vmatprep.subr.mxu0 0.0
        %527 = vmatpush1.msra.mxu0 0.0
        %528 = vmatprep.subr.mxu0 0.0
        %529 = vmatpush1.msra.mxu0 0.0
        %530 = vmatprep.subr.mxu0 0.0
        %531 = vmatpush1.msra.mxu0 0.0
        %532 = vmatprep.subr.mxu0 0.0
        %533 = vmatpush1.msra.mxu0 0.0
        %534 = vmatprep.subr.mxu0 0.0
        %535 = vmatpush1.msra.mxu0 0.0
        %536 = vmatprep.subr.mxu0 0.0
        %537 = vmatpush1.msra.mxu0 0.0
        %538 = vmatprep.subr.mxu0 0.0
        %539 = vmatpush1.msra.mxu0 0.0
        %540 = vmatprep.subr.mxu0 0.0
        %541 = vmatpush1.msra.mxu0 0.0
        %542 = vmatprep.subr.mxu0 0.0
        %543 = vmatpush1.msra.mxu0 0.0
        %544 = vmatprep.subr.mxu0 0.0
        %545 = vmatpush1.msra.mxu0 0.0
        %546 = vmatprep.subr.mxu0 0.0
        %547 = vmatpush1.msra.mxu0 0.0
        %548 = vmatprep.subr.mxu0 0.0
        %549 = vmatpush1.msra.mxu0 0.0
        %550 = vmatprep.subr.mxu0 0.0
        %551 = vmatpush1.msra.mxu0 0.0
        %552 = vmatprep.subr.mxu0 0.0
        %553 = vmatpush1.msra.mxu0 0.0
        %554 = vmatprep.subr.mxu0 0.0
        %555 = vmatpush1.msra.mxu0 0.0
        %556 = vmatprep.subr.mxu0 0.0
        %557 = vmatpush1.msra.mxu0 0.0
        %558 = vmatprep.subr.mxu0 0.0
        %559 = vmatpush1.msra.mxu0 0.0
        %560 = vmatprep.subr.mxu0 0.0
        %561 = vmatpush1.msra.mxu0 0.0
        %562 = vmatprep.subr.mxu0 0.0
        %563 = vmatpush1.msra.mxu0 0.0
        %564 = vmatprep.subr.mxu0 0.0
        %565 = vmatpush1.msra.mxu0 0.0
        %566 = vmatprep.subr.mxu0 0.0
        %567 = vmatpush1.msra.mxu0 0.0
        %568 = vmatprep.subr.mxu0 0.0
        %569 = vmatpush1.msra.mxu0 0.0
        %570 = vmatprep.subr.mxu0 0.0
        %571 = vmatpush1.msra.mxu0 0.0
        %572 = vmatprep.subr.mxu0 0.0
        %573 = vmatpush1.msra.mxu0 0.0
        %574 = vmatprep.subr.mxu0 0.0
        %575 = vmatpush1.msra.mxu0 0.0
        %576 = vmatprep.subr.mxu0 0.0
        %577 = vmatpush1.msra.mxu0 0.0
        %578 = vmatprep.subr.mxu0 0.0
        %579 = vmatpush1.msra.mxu0 0.0
        %580 = vmatprep.mubr.f32.mxu0 0.0
        %581 = vmatmul.mubr.f32.gmra.mrb[0].mxu0 %v182
        %v582 = vpop.f32.mrb[0].mxu0
        %v583 = vadd.f32 0.0, %v582
        %v584 = vpop.f32.mrb[0].mxu0
        %585 = vmatprep.mubr.f32.mxu0 0.0
        %586 = vmatmul.mubr.f32.gmra.mrb[0].mxu0 %v185
        %v587 = vpop.f32.mrb[0].mxu0
        %v588 = vadd.f32 0.0, %v587
        %v589 = vpop.f32.mrb[0].mxu0
        %590 = vdwg.mxu0
        %v592 = vsel %vm262, %v583, 0
        %v595 = vsel %vm262, %v588, 0
        %597 = vmatprep.subr.mxu0 0.0
        %598 = vmatpush1.msra.mxu0 %v271
        %599 = vmatprep.subr.mxu0 0.0
        %600 = vmatpush1.msra.mxu0 0.0
        %601 = vmatprep.subr.mxu0 0.0
        %602 = vmatpush1.msra.mxu0 0.0
        %603 = vmatprep.subr.mxu0 0.0
        %604 = vmatpush1.msra.mxu0 0.0
        %605 = vmatprep.subr.mxu0 0.0
        %606 = vmatpush1.msra.mxu0 0.0
        %607 = vmatprep.subr.mxu0 0.0
        %608 = vmatpush1.msra.mxu0 0.0
        %609 = vmatprep.subr.mxu0 0.0
        %610 = vmatpush1.msra.mxu0 0.0
        %611 = vmatprep.subr.mxu0 0.0
        %612 = vmatpush1.msra.mxu0 0.0
        %613 = vmatprep.subr.mxu0 0.0
        %614 = vmatpush1.msra.mxu0 0.0
        %615 = vmatprep.subr.mxu0 0.0
        %616 = vmatpush1.msra.mxu0 0.0
        %617 = vmatprep.subr.mxu0 0.0
        %618 = vmatpush1.msra.mxu0 0.0
        %619 = vmatprep.subr.mxu0 0.0
        %620 = vmatpush1.msra.mxu0 0.0
        %621 = vmatprep.subr.mxu0 0.0
        %622 = vmatpush1.msra.mxu0 0.0
        %623 = vmatprep.subr.mxu0 0.0
        %624 = vmatpush1.msra.mxu0 0.0
        %625 = vmatprep.subr.mxu0 0.0
        %626 = vmatpush1.msra.mxu0 0.0
        %627 = vmatprep.subr.mxu0 0.0
        %628 = vmatpush1.msra.mxu0 0.0
        %629 = vmatprep.subr.mxu0 0.0
        %630 = vmatpush1.msra.mxu0 0.0
        %631 = vmatprep.subr.mxu0 0.0
        %632 = vmatpush1.msra.mxu0 0.0
        %633 = vmatprep.subr.mxu0 0.0
        %634 = vmatpush1.msra.mxu0 0.0
        %635 = vmatprep.subr.mxu0 0.0
        %636 = vmatpush1.msra.mxu0 0.0
        %637 = vmatprep.subr.mxu0 0.0
        %638 = vmatpush1.msra.mxu0 0.0
        %639 = vmatprep.subr.mxu0 0.0
        %640 = vmatpush1.msra.mxu0 0.0
        %641 = vmatprep.subr.mxu0 0.0
        %642 = vmatpush1.msra.mxu0 0.0
        %643 = vmatprep.subr.mxu0 0.0
        %644 = vmatpush1.msra.mxu0 0.0
        %645 = vmatprep.subr.mxu0 0.0
        %646 = vmatpush1.msra.mxu0 0.0
        %647 = vmatprep.subr.mxu0 0.0
        %648 = vmatpush1.msra.mxu0 0.0
        %649 = vmatprep.subr.mxu0 0.0
        %650 = vmatpush1.msra.mxu0 0.0
        %651 = vmatprep.subr.mxu0 0.0
        %652 = vmatpush1.msra.mxu0 0.0
        %653 = vmatprep.subr.mxu0 0.0
        %654 = vmatpush1.msra.mxu0 0.0
        %655 = vmatprep.subr.mxu0 0.0
        %656 = vmatpush1.msra.mxu0 0.0
        %657 = vmatprep.subr.mxu0 0.0
        %658 = vmatpush1.msra.mxu0 0.0
        %659 = vmatprep.subr.mxu0 0.0
        %660 = vmatpush1.msra.mxu0 0.0
        %661 = vmatprep.mubr.f32.mxu0 0.0
        %662 = vmatmul.mubr.f32.gmra.mrb[0].mxu0 %v592
        %v663 = vpop.f32.mrb[0].mxu0
        %v664 = vadd.f32 0.0, %v663
        %v665 = vpop.f32.mrb[0].mxu0
        %666 = vmatprep.mubr.f32.mxu0 0.0
        %667 = vmatmul.mubr.f32.gmra.mrb[0].mxu0 %v595
        %v668 = vpop.f32.mrb[0].mxu0
        %v669 = vadd.f32 0.0, %v668
        %v670 = vpop.f32.mrb[0].mxu0
        %671 = vdwg.mxu0
        %s672 = scalar_lea.vmem %s166, 32 [#allocation2]
        %673 = vst.msk [vmem:[%s672] sm:$0xff] %vm348, %v664
        %674 = vst.msk [vmem:[%s672 + $0x8] sm:$0xff] %vm348, %v669
        %s675 = scalar_lea.vmem %s172, 48
        %v676 = vld [vmem:[%s675] sm:$0xff]
        %v677 = vld [vmem:[%s675 + $0x8] sm:$0xff]
        %678 = vmatprep.subr.mxu0 0.0
        %679 = vmatpush1.msra.mxu0 %v676
        %680 = vmatprep.subr.mxu0 0.0
        %681 = vmatpush1.msra.mxu0 %v677
        %682 = vmatprep.subr.mxu0 0.0
        %683 = vmatpush1.msra.mxu0 0.0
        %684 = vmatprep.subr.mxu0 0.0
        %685 = vmatpush1.msra.mxu0 0.0
        %686 = vmatprep.subr.mxu0 0.0
        %687 = vmatpush1.msra.mxu0 0.0
        %688 = vmatprep.subr.mxu0 0.0
        %689 = vmatpush1.msra.mxu0 0.0
        %690 = vmatprep.subr.mxu0 0.0
        %691 = vmatpush1.msra.mxu0 0.0
        %692 = vmatprep.subr.mxu0 0.0
        %693 = vmatpush1.msra.mxu0 0.0
        %694 = vmatprep.subr.mxu0 0.0
        %695 = vmatpush1.msra.mxu0 0.0
        %696 = vmatprep.subr.mxu0 0.0
        %697 = vmatpush1.msra.mxu0 0.0
        %698 = vmatprep.subr.mxu0 0.0
        %699 = vmatpush1.msra.mxu0 0.0
        %700 = vmatprep.subr.mxu0 0.0
        %701 = vmatpush1.msra.mxu0 0.0
        %702 = vmatprep.subr.mxu0 0.0
        %703 = vmatpush1.msra.mxu0 0.0
        %704 = vmatprep.subr.mxu0 0.0
        %705 = vmatpush1.msra.mxu0 0.0
        %706 = vmatprep.subr.mxu0 0.0
        %707 = vmatpush1.msra.mxu0 0.0
        %708 = vmatprep.subr.mxu0 0.0
        %709 = vmatpush1.msra.mxu0 0.0
        %710 = vmatprep.subr.mxu0 0.0
        %711 = vmatpush1.msra.mxu0 0.0
        %712 = vmatprep.subr.mxu0 0.0
        %713 = vmatpush1.msra.mxu0 0.0
        %714 = vmatprep.subr.mxu0 0.0
        %715 = vmatpush1.msra.mxu0 0.0
        %716 = vmatprep.subr.mxu0 0.0
        %717 = vmatpush1.msra.mxu0 0.0
        %718 = vmatprep.subr.mxu0 0.0
        %719 = vmatpush1.msra.mxu0 0.0
        %720 = vmatprep.subr.mxu0 0.0
        %721 = vmatpush1.msra.mxu0 0.0
        %722 = vmatprep.subr.mxu0 0.0
        %723 = vmatpush1.msra.mxu0 0.0
        %724 = vmatprep.subr.mxu0 0.0
        %725 = vmatpush1.msra.mxu0 0.0
        %726 = vmatprep.subr.mxu0 0.0
        %727 = vmatpush1.msra.mxu0 0.0
        %728 = vmatprep.subr.mxu0 0.0
        %729 = vmatpush1.msra.mxu0 0.0
        %730 = vmatprep.subr.mxu0 0.0
        %731 = vmatpush1.msra.mxu0 0.0
        %732 = vmatprep.subr.mxu0 0.0
        %733 = vmatpush1.msra.mxu0 0.0
        %734 = vmatprep.subr.mxu0 0.0
        %735 = vmatpush1.msra.mxu0 0.0
        %736 = vmatprep.subr.mxu0 0.0
        %737 = vmatpush1.msra.mxu0 0.0
        %738 = vmatprep.subr.mxu0 0.0
        %739 = vmatpush1.msra.mxu0 0.0
        %740 = vmatprep.subr.mxu0 0.0
        %741 = vmatpush1.msra.mxu0 0.0
        %742 = vmatprep.mubr.f32.mxu0 0.0
        %743 = vmatmul.mubr.f32.gmra.mrb[0].mxu0 %v182
        %v744 = vpop.f32.mrb[0].mxu0
        %v745 = vadd.f32 0.0, %v744
        %v746 = vpop.f32.mrb[0].mxu0
        %747 = vmatprep.mubr.f32.mxu0 0.0
        %748 = vmatmul.mubr.f32.gmra.mrb[0].mxu0 %v185
        %v749 = vpop.f32.mrb[0].mxu0
        %v750 = vadd.f32 0.0, %v749
        %v751 = vpop.f32.mrb[0].mxu0
        %752 = vdwg.mxu0
        %v754 = vsel %vm262, %v745, 0
        %v757 = vsel %vm262, %v750, 0
        %759 = vmatprep.subr.mxu0 0.0
        %760 = vmatpush1.msra.mxu0 %v271
        %761 = vmatprep.subr.mxu0 0.0
        %762 = vmatpush1.msra.mxu0 0.0
        %763 = vmatprep.subr.mxu0 0.0
        %764 = vmatpush1.msra.mxu0 0.0
        %765 = vmatprep.subr.mxu0 0.0
        %766 = vmatpush1.msra.mxu0 0.0
        %767 = vmatprep.subr.mxu0 0.0
        %768 = vmatpush1.msra.mxu0 0.0
        %769 = vmatprep.subr.mxu0 0.0
        %770 = vmatpush1.msra.mxu0 0.0
        %771 = vmatprep.subr.mxu0 0.0
        %772 = vmatpush1.msra.mxu0 0.0
        %773 = vmatprep.subr.mxu0 0.0
        %774 = vmatpush1.msra.mxu0 0.0
        %775 = vmatprep.subr.mxu0 0.0
        %776 = vmatpush1.msra.mxu0 0.0
        %777 = vmatprep.subr.mxu0 0.0
        %778 = vmatpush1.msra.mxu0 0.0
        %779 = vmatprep.subr.mxu0 0.0
        %780 = vmatpush1.msra.mxu0 0.0
        %781 = vmatprep.subr.mxu0 0.0
        %782 = vmatpush1.msra.mxu0 0.0
        %783 = vmatprep.subr.mxu0 0.0
        %784 = vmatpush1.msra.mxu0 0.0
        %785 = vmatprep.subr.mxu0 0.0
        %786 = vmatpush1.msra.mxu0 0.0
        %787 = vmatprep.subr.mxu0 0.0
        %788 = vmatpush1.msra.mxu0 0.0
        %789 = vmatprep.subr.mxu0 0.0
        %790 = vmatpush1.msra.mxu0 0.0
        %791 = vmatprep.subr.mxu0 0.0
        %792 = vmatpush1.msra.mxu0 0.0
        %793 = vmatprep.subr.mxu0 0.0
        %794 = vmatpush1.msra.mxu0 0.0
        %795 = vmatprep.subr.mxu0 0.0
        %796 = vmatpush1.msra.mxu0 0.0
        %797 = vmatprep.subr.mxu0 0.0
        %798 = vmatpush1.msra.mxu0 0.0
        %799 = vmatprep.subr.mxu0 0.0
        %800 = vmatpush1.msra.mxu0 0.0
        %801 = vmatprep.subr.mxu0 0.0
        %802 = vmatpush1.msra.mxu0 0.0
        %803 = vmatprep.subr.mxu0 0.0
        %804 = vmatpush1.msra.mxu0 0.0
        %805 = vmatprep.subr.mxu0 0.0
        %806 = vmatpush1.msra.mxu0 0.0
        %807 = vmatprep.subr.mxu0 0.0
        %808 = vmatpush1.msra.mxu0 0.0
        %809 = vmatprep.subr.mxu0 0.0
        %810 = vmatpush1.msra.mxu0 0.0
        %811 = vmatprep.subr.mxu0 0.0
        %812 = vmatpush1.msra.mxu0 0.0
        %813 = vmatprep.subr.mxu0 0.0
        %814 = vmatpush1.msra.mxu0 0.0
        %815 = vmatprep.subr.mxu0 0.0
        %816 = vmatpush1.msra.mxu0 0.0
        %817 = vmatprep.subr.mxu0 0.0
        %818 = vmatpush1.msra.mxu0 0.0
        %819 = vmatprep.subr.mxu0 0.0
        %820 = vmatpush1.msra.mxu0 0.0
        %821 = vmatprep.subr.mxu0 0.0
        %822 = vmatpush1.msra.mxu0 0.0
        %823 = vmatprep.mubr.f32.mxu0 0.0
        %824 = vmatmul.mubr.f32.gmra.mrb[0].mxu0 %v754
        %v825 = vpop.f32.mrb[0].mxu0
        %v826 = vadd.f32 0.0, %v825
        %v827 = vpop.f32.mrb[0].mxu0
        %828 = vmatprep.mubr.f32.mxu0 0.0
        %829 = vmatmul.mubr.f32.gmra.mrb[0].mxu0 %v757
        %v830 = vpop.f32.mrb[0].mxu0
        %v831 = vadd.f32 0.0, %v830
        %v832 = vpop.f32.mrb[0].mxu0
        %833 = vdwg.mxu0
        %s834 = scalar_lea.vmem %s166, 48 [#allocation2]
        %835 = vst.msk [vmem:[%s834] sm:$0xff] %vm348, %v826
        %836 = vst.msk [vmem:[%s834 + $0x8] sm:$0xff] %vm348, %v831
        %s837 = scalar_lea.vmem %s172, 64
        %v838 = vld [vmem:[%s837] sm:$0xff]
        %v839 = vld [vmem:[%s837 + $0x8] sm:$0xff]
        %840 = vmatprep.subr.mxu0 0.0
        %841 = vmatpush1.msra.mxu0 %v838
        %842 = vmatprep.subr.mxu0 0.0
        %843 = vmatpush1.msra.mxu0 %v839
        %844 = vmatprep.subr.mxu0 0.0
        %845 = vmatpush1.msra.mxu0 0.0
        %846 = vmatprep.subr.mxu0 0.0
        %847 = vmatpush1.msra.mxu0 0.0
        %848 = vmatprep.subr.mxu0 0.0
        %849 = vmatpush1.msra.mxu0 0.0
        %850 = vmatprep.subr.mxu0 0.0
        %851 = vmatpush1.msra.mxu0 0.0
        %852 = vmatprep.subr.mxu0 0.0
        %853 = vmatpush1.msra.mxu0 0.0
        %854 = vmatprep.subr.mxu0 0.0
        %855 = vmatpush1.msra.mxu0 0.0
        %856 = vmatprep.subr.mxu0 0.0
        %857 = vmatpush1.msra.mxu0 0.0
        %858 = vmatprep.subr.mxu0 0.0
        %859 = vmatpush1.msra.mxu0 0.0
        %860 = vmatprep.subr.mxu0 0.0
        %861 = vmatpush1.msra.mxu0 0.0
        %862 = vmatprep.subr.mxu0 0.0
        %863 = vmatpush1.msra.mxu0 0.0
        %864 = vmatprep.subr.mxu0 0.0
        %865 = vmatpush1.msra.mxu0 0.0
        %866 = vmatprep.subr.mxu0 0.0
        %867 = vmatpush1.msra.mxu0 0.0
        %868 = vmatprep.subr.mxu0 0.0
        %869 = vmatpush1.msra.mxu0 0.0
        %870 = vmatprep.subr.mxu0 0.0
        %871 = vmatpush1.msra.mxu0 0.0
        %872 = vmatprep.subr.mxu0 0.0
        %873 = vmatpush1.msra.mxu0 0.0
        %874 = vmatprep.subr.mxu0 0.0
        %875 = vmatpush1.msra.mxu0 0.0
        %876 = vmatprep.subr.mxu0 0.0
        %877 = vmatpush1.msra.mxu0 0.0
        %878 = vmatprep.subr.mxu0 0.0
        %879 = vmatpush1.msra.mxu0 0.0
        %880 = vmatprep.subr.mxu0 0.0
        %881 = vmatpush1.msra.mxu0 0.0
        %882 = vmatprep.subr.mxu0 0.0
        %883 = vmatpush1.msra.mxu0 0.0
        %884 = vmatprep.subr.mxu0 0.0
        %885 = vmatpush1.msra.mxu0 0.0
        %886 = vmatprep.subr.mxu0 0.0
        %887 = vmatpush1.msra.mxu0 0.0
        %888 = vmatprep.subr.mxu0 0.0
        %889 = vmatpush1.msra.mxu0 0.0
        %890 = vmatprep.subr.mxu0 0.0
        %891 = vmatpush1.msra.mxu0 0.0
        %892 = vmatprep.subr.mxu0 0.0
        %893 = vmatpush1.msra.mxu0 0.0
        %894 = vmatprep.subr.mxu0 0.0
        %895 = vmatpush1.msra.mxu0 0.0
        %896 = vmatprep.subr.mxu0 0.0
        %897 = vmatpush1.msra.mxu0 0.0
        %898 = vmatprep.subr.mxu0 0.0
        %899 = vmatpush1.msra.mxu0 0.0
        %900 = vmatprep.subr.mxu0 0.0
        %901 = vmatpush1.msra.mxu0 0.0
        %902 = vmatprep.subr.mxu0 0.0
        %903 = vmatpush1.msra.mxu0 0.0
        %904 = vmatprep.mubr.f32.mxu0 0.0
        %905 = vmatmul.mubr.f32.gmra.mrb[0].mxu0 %v182
        %v906 = vpop.f32.mrb[0].mxu0
        %v907 = vadd.f32 0.0, %v906
        %v908 = vpop.f32.mrb[0].mxu0
        %909 = vmatprep.mubr.f32.mxu0 0.0
        %910 = vmatmul.mubr.f32.gmra.mrb[0].mxu0 %v185
        %v911 = vpop.f32.mrb[0].mxu0
        %v912 = vadd.f32 0.0, %v911
        %v913 = vpop.f32.mrb[0].mxu0
        %914 = vdwg.mxu0
        %v916 = vsel %vm262, %v907, 0
        %v919 = vsel %vm262, %v912, 0
        %921 = vmatprep.subr.mxu0 0.0
        %922 = vmatpush1.msra.mxu0 %v271
        %923 = vmatprep.subr.mxu0 0.0
        %924 = vmatpush1.msra.mxu0 0.0
        %925 = vmatprep.subr.mxu0 0.0
        %926 = vmatpush1.msra.mxu0 0.0
        %927 = vmatprep.subr.mxu0 0.0
        %928 = vmatpush1.msra.mxu0 0.0
        %929 = vmatprep.subr.mxu0 0.0
        %930 = vmatpush1.msra.mxu0 0.0
        %931 = vmatprep.subr.mxu0 0.0
        %932 = vmatpush1.msra.mxu0 0.0
        %933 = vmatprep.subr.mxu0 0.0
        %934 = vmatpush1.msra.mxu0 0.0
        %935 = vmatprep.subr.mxu0 0.0
        %936 = vmatpush1.msra.mxu0 0.0
        %937 = vmatprep.subr.mxu0 0.0
        %938 = vmatpush1.msra.mxu0 0.0
        %939 = vmatprep.subr.mxu0 0.0
        %940 = vmatpush1.msra.mxu0 0.0
        %941 = vmatprep.subr.mxu0 0.0
        %942 = vmatpush1.msra.mxu0 0.0
        %943 = vmatprep.subr.mxu0 0.0
        %944 = vmatpush1.msra.mxu0 0.0
        %945 = vmatprep.subr.mxu0 0.0
        %946 = vmatpush1.msra.mxu0 0.0
        %947 = vmatprep.subr.mxu0 0.0
        %948 = vmatpush1.msra.mxu0 0.0
        %949 = vmatprep.subr.mxu0 0.0
        %950 = vmatpush1.msra.mxu0 0.0
        %951 = vmatprep.subr.mxu0 0.0
        %952 = vmatpush1.msra.mxu0 0.0
        %953 = vmatprep.subr.mxu0 0.0
        %954 = vmatpush1.msra.mxu0 0.0
        %955 = vmatprep.subr.mxu0 0.0
        %956 = vmatpush1.msra.mxu0 0.0
        %957 = vmatprep.subr.mxu0 0.0
        %958 = vmatpush1.msra.mxu0 0.0
        %959 = vmatprep.subr.mxu0 0.0
        %960 = vmatpush1.msra.mxu0 0.0
        %961 = vmatprep.subr.mxu0 0.0
        %962 = vmatpush1.msra.mxu0 0.0
        %963 = vmatprep.subr.mxu0 0.0
        %964 = vmatpush1.msra.mxu0 0.0
        %965 = vmatprep.subr.mxu0 0.0
        %966 = vmatpush1.msra.mxu0 0.0
        %967 = vmatprep.subr.mxu0 0.0
        %968 = vmatpush1.msra.mxu0 0.0
        %969 = vmatprep.subr.mxu0 0.0
        %970 = vmatpush1.msra.mxu0 0.0
        %971 = vmatprep.subr.mxu0 0.0
        %972 = vmatpush1.msra.mxu0 0.0
        %973 = vmatprep.subr.mxu0 0.0
        %974 = vmatpush1.msra.mxu0 0.0
        %975 = vmatprep.subr.mxu0 0.0
        %976 = vmatpush1.msra.mxu0 0.0
        %977 = vmatprep.subr.mxu0 0.0
        %978 = vmatpush1.msra.mxu0 0.0
        %979 = vmatprep.subr.mxu0 0.0
        %980 = vmatpush1.msra.mxu0 0.0
        %981 = vmatprep.subr.mxu0 0.0
        %982 = vmatpush1.msra.mxu0 0.0
        %983 = vmatprep.subr.mxu0 0.0
        %984 = vmatpush1.msra.mxu0 0.0
        %985 = vmatprep.mubr.f32.mxu0 0.0
        %986 = vmatmul.mubr.f32.gmra.mrb[0].mxu0 %v916
        %v987 = vpop.f32.mrb[0].mxu0
        %v988 = vadd.f32 0.0, %v987
        %v989 = vpop.f32.mrb[0].mxu0
        %990 = vmatprep.mubr.f32.mxu0 0.0
        %991 = vmatmul.mubr.f32.gmra.mrb[0].mxu0 %v919
        %v992 = vpop.f32.mrb[0].mxu0
        %v993 = vadd.f32 0.0, %v992
        %v994 = vpop.f32.mrb[0].mxu0
        %995 = vdwg.mxu0
        %s996 = scalar_lea.vmem %s166, 64 [#allocation2]
        %997 = vst.msk [vmem:[%s996] sm:$0xff] %vm348, %v988
        %998 = vst.msk [vmem:[%s996 + $0x8] sm:$0xff] %vm348, %v993
        %s999 = scalar_lea.vmem %s172, 80
        %v1000 = vld [vmem:[%s999] sm:$0xff]
        %v1001 = vld [vmem:[%s999 + $0x8] sm:$0xff]
        %1002 = vmatprep.subr.mxu0 0.0
        %1003 = vmatpush1.msra.mxu0 %v1000
        %1004 = vmatprep.subr.mxu0 0.0
        %1005 = vmatpush1.msra.mxu0 %v1001
        %1006 = vmatprep.subr.mxu0 0.0
        %1007 = vmatpush1.msra.mxu0 0.0
        %1008 = vmatprep.subr.mxu0 0.0
        %1009 = vmatpush1.msra.mxu0 0.0
        %1010 = vmatprep.subr.mxu0 0.0
        %1011 = vmatpush1.msra.mxu0 0.0
        %1012 = vmatprep.subr.mxu0 0.0
        %1013 = vmatpush1.msra.mxu0 0.0
        %1014 = vmatprep.subr.mxu0 0.0
        %1015 = vmatpush1.msra.mxu0 0.0
        %1016 = vmatprep.subr.mxu0 0.0
        %1017 = vmatpush1.msra.mxu0 0.0
        %1018 = vmatprep.subr.mxu0 0.0
        %1019 = vmatpush1.msra.mxu0 0.0
        %1020 = vmatprep.subr.mxu0 0.0
        %1021 = vmatpush1.msra.mxu0 0.0
        %1022 = vmatprep.subr.mxu0 0.0
        %1023 = vmatpush1.msra.mxu0 0.0
        %1024 = vmatprep.subr.mxu0 0.0
        %1025 = vmatpush1.msra.mxu0 0.0
        %1026 = vmatprep.subr.mxu0 0.0
        %1027 = vmatpush1.msra.mxu0 0.0
        %1028 = vmatprep.subr.mxu0 0.0
        %1029 = vmatpush1.msra.mxu0 0.0
        %1030 = vmatprep.subr.mxu0 0.0
        %1031 = vmatpush1.msra.mxu0 0.0
        %1032 = vmatprep.subr.mxu0 0.0
        %1033 = vmatpush1.msra.mxu0 0.0
        %1034 = vmatprep.subr.mxu0 0.0
        %1035 = vmatpush1.msra.mxu0 0.0
        %1036 = vmatprep.subr.mxu0 0.0
        %1037 = vmatpush1.msra.mxu0 0.0
        %1038 = vmatprep.subr.mxu0 0.0
        %1039 = vmatpush1.msra.mxu0 0.0
        %1040 = vmatprep.subr.mxu0 0.0
        %1041 = vmatpush1.msra.mxu0 0.0
        %1042 = vmatprep.subr.mxu0 0.0
        %1043 = vmatpush1.msra.mxu0 0.0
        %1044 = vmatprep.subr.mxu0 0.0
        %1045 = vmatpush1.msra.mxu0 0.0
        %1046 = vmatprep.subr.mxu0 0.0
        %1047 = vmatpush1.msra.mxu0 0.0
        %1048 = vmatprep.subr.mxu0 0.0
        %1049 = vmatpush1.msra.mxu0 0.0
        %1050 = vmatprep.subr.mxu0 0.0
        %1051 = vmatpush1.msra.mxu0 0.0
        %1052 = vmatprep.subr.mxu0 0.0
        %1053 = vmatpush1.msra.mxu0 0.0
        %1054 = vmatprep.subr.mxu0 0.0
        %1055 = vmatpush1.msra.mxu0 0.0
        %1056 = vmatprep.subr.mxu0 0.0
        %1057 = vmatpush1.msra.mxu0 0.0
        %1058 = vmatprep.subr.mxu0 0.0
        %1059 = vmatpush1.msra.mxu0 0.0
        %1060 = vmatprep.subr.mxu0 0.0
        %1061 = vmatpush1.msra.mxu0 0.0
        %1062 = vmatprep.subr.mxu0 0.0
        %1063 = vmatpush1.msra.mxu0 0.0
        %1064 = vmatprep.subr.mxu0 0.0
        %1065 = vmatpush1.msra.mxu0 0.0
        %1066 = vmatprep.mubr.f32.mxu0 0.0
        %1067 = vmatmul.mubr.f32.gmra.mrb[0].mxu0 %v182
        %v1068 = vpop.f32.mrb[0].mxu0
        %v1069 = vadd.f32 0.0, %v1068
        %v1070 = vpop.f32.mrb[0].mxu0
        %1071 = vmatprep.mubr.f32.mxu0 0.0
        %1072 = vmatmul.mubr.f32.gmra.mrb[0].mxu0 %v185
        %v1073 = vpop.f32.mrb[0].mxu0
        %v1074 = vadd.f32 0.0, %v1073
        %v1075 = vpop.f32.mrb[0].mxu0
        %1076 = vdwg.mxu0
        %v1078 = vsel %vm262, %v1069, 0
        %v1081 = vsel %vm262, %v1074, 0
        %1083 = vmatprep.subr.mxu0 0.0
        %1084 = vmatpush1.msra.mxu0 %v271
        %1085 = vmatprep.subr.mxu0 0.0
        %1086 = vmatpush1.msra.mxu0 0.0
        %1087 = vmatprep.subr.mxu0 0.0
        %1088 = vmatpush1.msra.mxu0 0.0
        %1089 = vmatprep.subr.mxu0 0.0
        %1090 = vmatpush1.msra.mxu0 0.0
        %1091 = vmatprep.subr.mxu0 0.0
        %1092 = vmatpush1.msra.mxu0 0.0
        %1093 = vmatprep.subr.mxu0 0.0
        %1094 = vmatpush1.msra.mxu0 0.0
        %1095 = vmatprep.subr.mxu0 0.0
        %1096 = vmatpush1.msra.mxu0 0.0
        %1097 = vmatprep.subr.mxu0 0.0
        %1098 = vmatpush1.msra.mxu0 0.0
        %1099 = vmatprep.subr.mxu0 0.0
        %1100 = vmatpush1.msra.mxu0 0.0
        %1101 = vmatprep.subr.mxu0 0.0
        %1102 = vmatpush1.msra.mxu0 0.0
        %1103 = vmatprep.subr.mxu0 0.0
        %1104 = vmatpush1.msra.mxu0 0.0
        %1105 = vmatprep.subr.mxu0 0.0
        %1106 = vmatpush1.msra.mxu0 0.0
        %1107 = vmatprep.subr.mxu0 0.0
        %1108 = vmatpush1.msra.mxu0 0.0
        %1109 = vmatprep.subr.mxu0 0.0
        %1110 = vmatpush1.msra.mxu0 0.0
        %1111 = vmatprep.subr.mxu0 0.0
        %1112 = vmatpush1.msra.mxu0 0.0
        %1113 = vmatprep.subr.mxu0 0.0
        %1114 = vmatpush1.msra.mxu0 0.0
        %1115 = vmatprep.subr.mxu0 0.0
        %1116 = vmatpush1.msra.mxu0 0.0
        %1117 = vmatprep.subr.mxu0 0.0
        %1118 = vmatpush1.msra.mxu0 0.0
        %1119 = vmatprep.subr.mxu0 0.0
        %1120 = vmatpush1.msra.mxu0 0.0
        %1121 = vmatprep.subr.mxu0 0.0
        %1122 = vmatpush1.msra.mxu0 0.0
        %1123 = vmatprep.subr.mxu0 0.0
        %1124 = vmatpush1.msra.mxu0 0.0
        %1125 = vmatprep.subr.mxu0 0.0
        %1126 = vmatpush1.msra.mxu0 0.0
        %1127 = vmatprep.subr.mxu0 0.0
        %1128 = vmatpush1.msra.mxu0 0.0
        %1129 = vmatprep.subr.mxu0 0.0
        %1130 = vmatpush1.msra.mxu0 0.0
        %1131 = vmatprep.subr.mxu0 0.0
        %1132 = vmatpush1.msra.mxu0 0.0
        %1133 = vmatprep.subr.mxu0 0.0
        %1134 = vmatpush1.msra.mxu0 0.0
        %1135 = vmatprep.subr.mxu0 0.0
        %1136 = vmatpush1.msra.mxu0 0.0
        %1137 = vmatprep.subr.mxu0 0.0
        %1138 = vmatpush1.msra.mxu0 0.0
        %1139 = vmatprep.subr.mxu0 0.0
        %1140 = vmatpush1.msra.mxu0 0.0
        %1141 = vmatprep.subr.mxu0 0.0
        %1142 = vmatpush1.msra.mxu0 0.0
        %1143 = vmatprep.subr.mxu0 0.0
        %1144 = vmatpush1.msra.mxu0 0.0
        %1145 = vmatprep.subr.mxu0 0.0
        %1146 = vmatpush1.msra.mxu0 0.0
        %1147 = vmatprep.mubr.f32.mxu0 0.0
        %1148 = vmatmul.mubr.f32.gmra.mrb[0].mxu0 %v1078
        %v1149 = vpop.f32.mrb[0].mxu0
        %v1150 = vadd.f32 0.0, %v1149
        %v1151 = vpop.f32.mrb[0].mxu0
        %1152 = vmatprep.mubr.f32.mxu0 0.0
        %1153 = vmatmul.mubr.f32.gmra.mrb[0].mxu0 %v1081
        %v1154 = vpop.f32.mrb[0].mxu0
        %v1155 = vadd.f32 0.0, %v1154
        %v1156 = vpop.f32.mrb[0].mxu0
        %1157 = vdwg.mxu0
        %s1158 = scalar_lea.vmem %s166, 80 [#allocation2]
        %1159 = vst.msk [vmem:[%s1158] sm:$0xff] %vm348, %v1150
        %1160 = vst.msk [vmem:[%s1158 + $0x8] sm:$0xff] %vm348, %v1155
        %s1161 = scalar_lea.vmem %s172, 96
        %v1162 = vld [vmem:[%s1161] sm:$0xff]
        %v1163 = vld [vmem:[%s1161 + $0x8] sm:$0xff]
        %1164 = vmatprep.subr.mxu0 0.0
        %1165 = vmatpush1.msra.mxu0 %v1162
        %1166 = vmatprep.subr.mxu0 0.0
        %1167 = vmatpush1.msra.mxu0 %v1163
        %1168 = vmatprep.subr.mxu0 0.0
        %1169 = vmatpush1.msra.mxu0 0.0
        %1170 = vmatprep.subr.mxu0 0.0
        %1171 = vmatpush1.msra.mxu0 0.0
        %1172 = vmatprep.subr.mxu0 0.0
        %1173 = vmatpush1.msra.mxu0 0.0
        %1174 = vmatprep.subr.mxu0 0.0
        %1175 = vmatpush1.msra.mxu0 0.0
        %1176 = vmatprep.subr.mxu0 0.0
        %1177 = vmatpush1.msra.mxu0 0.0
        %1178 = vmatprep.subr.mxu0 0.0
        %1179 = vmatpush1.msra.mxu0 0.0
        %1180 = vmatprep.subr.mxu0 0.0
        %1181 = vmatpush1.msra.mxu0 0.0
        %1182 = vmatprep.subr.mxu0 0.0
        %1183 = vmatpush1.msra.mxu0 0.0
        %1184 = vmatprep.subr.mxu0 0.0
        %1185 = vmatpush1.msra.mxu0 0.0
        %1186 = vmatprep.subr.mxu0 0.0
        %1187 = vmatpush1.msra.mxu0 0.0
        %1188 = vmatprep.subr.mxu0 0.0
        %1189 = vmatpush1.msra.mxu0 0.0
        %1190 = vmatprep.subr.mxu0 0.0
        %1191 = vmatpush1.msra.mxu0 0.0
        %1192 = vmatprep.subr.mxu0 0.0
        %1193 = vmatpush1.msra.mxu0 0.0
        %1194 = vmatprep.subr.mxu0 0.0
        %1195 = vmatpush1.msra.mxu0 0.0
        %1196 = vmatprep.subr.mxu0 0.0
        %1197 = vmatpush1.msra.mxu0 0.0
        %1198 = vmatprep.subr.mxu0 0.0
        %1199 = vmatpush1.msra.mxu0 0.0
        %1200 = vmatprep.subr.mxu0 0.0
        %1201 = vmatpush1.msra.mxu0 0.0
        %1202 = vmatprep.subr.mxu0 0.0
        %1203 = vmatpush1.msra.mxu0 0.0
        %1204 = vmatprep.subr.mxu0 0.0
        %1205 = vmatpush1.msra.mxu0 0.0
        %1206 = vmatprep.subr.mxu0 0.0
        %1207 = vmatpush1.msra.mxu0 0.0
        %1208 = vmatprep.subr.mxu0 0.0
        %1209 = vmatpush1.msra.mxu0 0.0
        %1210 = vmatprep.subr.mxu0 0.0
        %1211 = vmatpush1.msra.mxu0 0.0
        %1212 = vmatprep.subr.mxu0 0.0
        %1213 = vmatpush1.msra.mxu0 0.0
        %1214 = vmatprep.subr.mxu0 0.0
        %1215 = vmatpush1.msra.mxu0 0.0
        %1216 = vmatprep.subr.mxu0 0.0
        %1217 = vmatpush1.msra.mxu0 0.0
        %1218 = vmatprep.subr.mxu0 0.0
        %1219 = vmatpush1.msra.mxu0 0.0
        %1220 = vmatprep.subr.mxu0 0.0
        %1221 = vmatpush1.msra.mxu0 0.0
        %1222 = vmatprep.subr.mxu0 0.0
        %1223 = vmatpush1.msra.mxu0 0.0
        %1224 = vmatprep.subr.mxu0 0.0
        %1225 = vmatpush1.msra.mxu0 0.0
        %1226 = vmatprep.subr.mxu0 0.0
        %1227 = vmatpush1.msra.mxu0 0.0
        %1228 = vmatprep.mubr.f32.mxu0 0.0
        %1229 = vmatmul.mubr.f32.gmra.mrb[0].mxu0 %v182
        %v1230 = vpop.f32.mrb[0].mxu0
        %v1231 = vadd.f32 0.0, %v1230
        %v1232 = vpop.f32.mrb[0].mxu0
        %1233 = vmatprep.mubr.f32.mxu0 0.0
        %1234 = vmatmul.mubr.f32.gmra.mrb[0].mxu0 %v185
        %v1235 = vpop.f32.mrb[0].mxu0
        %v1236 = vadd.f32 0.0, %v1235
        %v1237 = vpop.f32.mrb[0].mxu0
        %1238 = vdwg.mxu0
        %v1240 = vsel %vm262, %v1231, 0
        %v1243 = vsel %vm262, %v1236, 0
        %1245 = vmatprep.subr.mxu0 0.0
        %1246 = vmatpush1.msra.mxu0 %v271
        %1247 = vmatprep.subr.mxu0 0.0
        %1248 = vmatpush1.msra.mxu0 0.0
        %1249 = vmatprep.subr.mxu0 0.0
        %1250 = vmatpush1.msra.mxu0 0.0
        %1251 = vmatprep.subr.mxu0 0.0
        %1252 = vmatpush1.msra.mxu0 0.0
        %1253 = vmatprep.subr.mxu0 0.0
        %1254 = vmatpush1.msra.mxu0 0.0
        %1255 = vmatprep.subr.mxu0 0.0
        %1256 = vmatpush1.msra.mxu0 0.0
        %1257 = vmatprep.subr.mxu0 0.0
        %1258 = vmatpush1.msra.mxu0 0.0
        %1259 = vmatprep.subr.mxu0 0.0
        %1260 = vmatpush1.msra.mxu0 0.0
        %1261 = vmatprep.subr.mxu0 0.0
        %1262 = vmatpush1.msra.mxu0 0.0
        %1263 = vmatprep.subr.mxu0 0.0
        %1264 = vmatpush1.msra.mxu0 0.0
        %1265 = vmatprep.subr.mxu0 0.0
        %1266 = vmatpush1.msra.mxu0 0.0
        %1267 = vmatprep.subr.mxu0 0.0
        %1268 = vmatpush1.msra.mxu0 0.0
        %1269 = vmatprep.subr.mxu0 0.0
        %1270 = vmatpush1.msra.mxu0 0.0
        %1271 = vmatprep.subr.mxu0 0.0
        %1272 = vmatpush1.msra.mxu0 0.0
        %1273 = vmatprep.subr.mxu0 0.0
        %1274 = vmatpush1.msra.mxu0 0.0
        %1275 = vmatprep.subr.mxu0 0.0
        %1276 = vmatpush1.msra.mxu0 0.0
        %1277 = vmatprep.subr.mxu0 0.0
        %1278 = vmatpush1.msra.mxu0 0.0
        %1279 = vmatprep.subr.mxu0 0.0
        %1280 = vmatpush1.msra.mxu0 0.0
        %1281 = vmatprep.subr.mxu0 0.0
        %1282 = vmatpush1.msra.mxu0 0.0
        %1283 = vmatprep.subr.mxu0 0.0
        %1284 = vmatpush1.msra.mxu0 0.0
        %1285 = vmatprep.subr.mxu0 0.0
        %1286 = vmatpush1.msra.mxu0 0.0
        %1287 = vmatprep.subr.mxu0 0.0
        %1288 = vmatpush1.msra.mxu0 0.0
        %1289 = vmatprep.subr.mxu0 0.0
        %1290 = vmatpush1.msra.mxu0 0.0
        %1291 = vmatprep.subr.mxu0 0.0
        %1292 = vmatpush1.msra.mxu0 0.0
        %1293 = vmatprep.subr.mxu0 0.0
        %1294 = vmatpush1.msra.mxu0 0.0
        %1295 = vmatprep.subr.mxu0 0.0
        %1296 = vmatpush1.msra.mxu0 0.0
        %1297 = vmatprep.subr.mxu0 0.0
        %1298 = vmatpush1.msra.mxu0 0.0
        %1299 = vmatprep.subr.mxu0 0.0
        %1300 = vmatpush1.msra.mxu0 0.0
        %1301 = vmatprep.subr.mxu0 0.0
        %1302 = vmatpush1.msra.mxu0 0.0
        %1303 = vmatprep.subr.mxu0 0.0
        %1304 = vmatpush1.msra.mxu0 0.0
        %1305 = vmatprep.subr.mxu0 0.0
        %1306 = vmatpush1.msra.mxu0 0.0
        %1307 = vmatprep.subr.mxu0 0.0
        %1308 = vmatpush1.msra.mxu0 0.0
        %1309 = vmatprep.mubr.f32.mxu0 0.0
        %1310 = vmatmul.mubr.f32.gmra.mrb[0].mxu0 %v1240
        %v1311 = vpop.f32.mrb[0].mxu0
        %v1312 = vadd.f32 0.0, %v1311
        %v1313 = vpop.f32.mrb[0].mxu0
        %1314 = vmatprep.mubr.f32.mxu0 0.0
        %1315 = vmatmul.mubr.f32.gmra.mrb[0].mxu0 %v1243
        %v1316 = vpop.f32.mrb[0].mxu0
        %v1317 = vadd.f32 0.0, %v1316
        %v1318 = vpop.f32.mrb[0].mxu0
        %1319 = vdwg.mxu0
        %s1320 = scalar_lea.vmem %s166, 96 [#allocation2]
        %1321 = vst.msk [vmem:[%s1320] sm:$0xff] %vm348, %v1312
        %1322 = vst.msk [vmem:[%s1320 + $0x8] sm:$0xff] %vm348, %v1317
        %s1323 = scalar_lea.vmem %s172, 112
        %v1324 = vld [vmem:[%s1323] sm:$0xff]
        %v1325 = vld [vmem:[%s1323 + $0x8] sm:$0xff]
        %1326 = vmatprep.subr.mxu0 0.0
        %1327 = vmatpush1.msra.mxu0 %v1324
        %1328 = vmatprep.subr.mxu0 0.0
        %1329 = vmatpush1.msra.mxu0 %v1325
        %1330 = vmatprep.subr.mxu0 0.0
        %1331 = vmatpush1.msra.mxu0 0.0
        %1332 = vmatprep.subr.mxu0 0.0
        %1333 = vmatpush1.msra.mxu0 0.0
        %1334 = vmatprep.subr.mxu0 0.0
        %1335 = vmatpush1.msra.mxu0 0.0
        %1336 = vmatprep.subr.mxu0 0.0
        %1337 = vmatpush1.msra.mxu0 0.0
        %1338 = vmatprep.subr.mxu0 0.0
        %1339 = vmatpush1.msra.mxu0 0.0
        %1340 = vmatprep.subr.mxu0 0.0
        %1341 = vmatpush1.msra.mxu0 0.0
        %1342 = vmatprep.subr.mxu0 0.0
        %1343 = vmatpush1.msra.mxu0 0.0
        %1344 = vmatprep.subr.mxu0 0.0
        %1345 = vmatpush1.msra.mxu0 0.0
        %1346 = vmatprep.subr.mxu0 0.0
        %1347 = vmatpush1.msra.mxu0 0.0
        %1348 = vmatprep.subr.mxu0 0.0
        %1349 = vmatpush1.msra.mxu0 0.0
        %1350 = vmatprep.subr.mxu0 0.0
        %1351 = vmatpush1.msra.mxu0 0.0
        %1352 = vmatprep.subr.mxu0 0.0
        %1353 = vmatpush1.msra.mxu0 0.0
        %1354 = vmatprep.subr.mxu0 0.0
        %1355 = vmatpush1.msra.mxu0 0.0
        %1356 = vmatprep.subr.mxu0 0.0
        %1357 = vmatpush1.msra.mxu0 0.0
        %1358 = vmatprep.subr.mxu0 0.0
        %1359 = vmatpush1.msra.mxu0 0.0
        %1360 = vmatprep.subr.mxu0 0.0
        %1361 = vmatpush1.msra.mxu0 0.0
        %1362 = vmatprep.subr.mxu0 0.0
        %1363 = vmatpush1.msra.mxu0 0.0
        %1364 = vmatprep.subr.mxu0 0.0
        %1365 = vmatpush1.msra.mxu0 0.0
        %1366 = vmatprep.subr.mxu0 0.0
        %1367 = vmatpush1.msra.mxu0 0.0
        %1368 = vmatprep.subr.mxu0 0.0
        %1369 = vmatpush1.msra.mxu0 0.0
        %1370 = vmatprep.subr.mxu0 0.0
        %1371 = vmatpush1.msra.mxu0 0.0
        %1372 = vmatprep.subr.mxu0 0.0
        %1373 = vmatpush1.msra.mxu0 0.0
        %1374 = vmatprep.subr.mxu0 0.0
        %1375 = vmatpush1.msra.mxu0 0.0
        %1376 = vmatprep.subr.mxu0 0.0
        %1377 = vmatpush1.msra.mxu0 0.0
        %1378 = vmatprep.subr.mxu0 0.0
        %1379 = vmatpush1.msra.mxu0 0.0
        %1380 = vmatprep.subr.mxu0 0.0
        %1381 = vmatpush1.msra.mxu0 0.0
        %1382 = vmatprep.subr.mxu0 0.0
        %1383 = vmatpush1.msra.mxu0 0.0
        %1384 = vmatprep.subr.mxu0 0.0
        %1385 = vmatpush1.msra.mxu0 0.0
        %1386 = vmatprep.subr.mxu0 0.0
        %1387 = vmatpush1.msra.mxu0 0.0
        %1388 = vmatprep.subr.mxu0 0.0
        %1389 = vmatpush1.msra.mxu0 0.0
        %1390 = vmatprep.mubr.f32.mxu0 0.0
        %1391 = vmatmul.mubr.f32.gmra.mrb[0].mxu0 %v182
        %v1392 = vpop.f32.mrb[0].mxu0
        %v1393 = vadd.f32 0.0, %v1392
        %v1394 = vpop.f32.mrb[0].mxu0
        %1395 = vmatprep.mubr.f32.mxu0 0.0
        %1396 = vmatmul.mubr.f32.gmra.mrb[0].mxu0 %v185
        %v1397 = vpop.f32.mrb[0].mxu0
        %v1398 = vadd.f32 0.0, %v1397
        %v1399 = vpop.f32.mrb[0].mxu0
        %1400 = vdwg.mxu0
        %v1402 = vsel %vm262, %v1393, 0
        %v1405 = vsel %vm262, %v1398, 0
        %1407 = vmatprep.subr.mxu0 0.0
        %1408 = vmatpush1.msra.mxu0 %v271
        %1409 = vmatprep.subr.mxu0 0.0
        %1410 = vmatpush1.msra.mxu0 0.0
        %1411 = vmatprep.subr.mxu0 0.0
        %1412 = vmatpush1.msra.mxu0 0.0
        %1413 = vmatprep.subr.mxu0 0.0
        %1414 = vmatpush1.msra.mxu0 0.0
        %1415 = vmatprep.subr.mxu0 0.0
        %1416 = vmatpush1.msra.mxu0 0.0
        %1417 = vmatprep.subr.mxu0 0.0
        %1418 = vmatpush1.msra.mxu0 0.0
        %1419 = vmatprep.subr.mxu0 0.0
        %1420 = vmatpush1.msra.mxu0 0.0
        %1421 = vmatprep.subr.mxu0 0.0
        %1422 = vmatpush1.msra.mxu0 0.0
        %1423 = vmatprep.subr.mxu0 0.0
        %1424 = vmatpush1.msra.mxu0 0.0
        %1425 = vmatprep.subr.mxu0 0.0
        %1426 = vmatpush1.msra.mxu0 0.0
        %1427 = vmatprep.subr.mxu0 0.0
        %1428 = vmatpush1.msra.mxu0 0.0
        %1429 = vmatprep.subr.mxu0 0.0
        %1430 = vmatpush1.msra.mxu0 0.0
        %1431 = vmatprep.subr.mxu0 0.0
        %1432 = vmatpush1.msra.mxu0 0.0
        %1433 = vmatprep.subr.mxu0 0.0
        %1434 = vmatpush1.msra.mxu0 0.0
        %1435 = vmatprep.subr.mxu0 0.0
        %1436 = vmatpush1.msra.mxu0 0.0
        %1437 = vmatprep.subr.mxu0 0.0
        %1438 = vmatpush1.msra.mxu0 0.0
        %1439 = vmatprep.subr.mxu0 0.0
        %1440 = vmatpush1.msra.mxu0 0.0
        %1441 = vmatprep.subr.mxu0 0.0
        %1442 = vmatpush1.msra.mxu0 0.0
        %1443 = vmatprep.subr.mxu0 0.0
        %1444 = vmatpush1.msra.mxu0 0.0
        %1445 = vmatprep.subr.mxu0 0.0
        %1446 = vmatpush1.msra.mxu0 0.0
        %1447 = vmatprep.subr.mxu0 0.0
        %1448 = vmatpush1.msra.mxu0 0.0
        %1449 = vmatprep.subr.mxu0 0.0
        %1450 = vmatpush1.msra.mxu0 0.0
        %1451 = vmatprep.subr.mxu0 0.0
        %1452 = vmatpush1.msra.mxu0 0.0
        %1453 = vmatprep.subr.mxu0 0.0
        %1454 = vmatpush1.msra.mxu0 0.0
        %1455 = vmatprep.subr.mxu0 0.0
        %1456 = vmatpush1.msra.mxu0 0.0
        %1457 = vmatprep.subr.mxu0 0.0
        %1458 = vmatpush1.msra.mxu0 0.0
        %1459 = vmatprep.subr.mxu0 0.0
        %1460 = vmatpush1.msra.mxu0 0.0
        %1461 = vmatprep.subr.mxu0 0.0
        %1462 = vmatpush1.msra.mxu0 0.0
        %1463 = vmatprep.subr.mxu0 0.0
        %1464 = vmatpush1.msra.mxu0 0.0
        %1465 = vmatprep.subr.mxu0 0.0
        %1466 = vmatpush1.msra.mxu0 0.0
        %1467 = vmatprep.subr.mxu0 0.0
        %1468 = vmatpush1.msra.mxu0 0.0
        %1469 = vmatprep.subr.mxu0 0.0
        %1470 = vmatpush1.msra.mxu0 0.0
        %1471 = vmatprep.mubr.f32.mxu0 0.0
        %1472 = vmatmul.mubr.f32.gmra.mrb[0].mxu0 %v1402
        %v1473 = vpop.f32.mrb[0].mxu0
        %v1474 = vadd.f32 0.0, %v1473
        %v1475 = vpop.f32.mrb[0].mxu0
        %1476 = vmatprep.mubr.f32.mxu0 0.0
        %1477 = vmatmul.mubr.f32.gmra.mrb[0].mxu0 %v1405
        %v1478 = vpop.f32.mrb[0].mxu0
        %v1479 = vadd.f32 0.0, %v1478
        %v1480 = vpop.f32.mrb[0].mxu0
        %1481 = vdwg.mxu0
        %s1482 = scalar_lea.vmem %s166, 112 [#allocation2]
        %1483 = vst.msk [vmem:[%s1482] sm:$0xff] %vm348, %v1474
        %1484 = vst.msk [vmem:[%s1482 + $0x8] sm:$0xff] %vm348, %v1479
        %s1485 = sand.u32 %s93, 1
        %s1486 = scalar_lea.sflag [#allocation3], %s1485
        %s1487 = sand.u32 %s93, 1
        %s1488 = smul.addr %s1487, 128
        %s1489 = scalar_lea.vmem [#allocation2], %s1488
        // Predicated region
        $region33: #{tpu_custom_call.1} parent=31 // pred_check
          %p1490 = pneg %p103
        $region34: #{tpu_custom_call.1} parent=31 // pred_check_branch
          %1492 = sbr.rel (%p1490) target = $region36
        $region35: #{tpu_custom_call.1} parent=31 // pred_region
          %s1493 = smul.u32 8, %s17
          %s1495 = ssub.s32 2048, 2048
          %1496 = vsyncadd %s1486, %s1495
          %s1497 = smul.addr %s1493, 2
          %s1498 = smul.addr %s1497, 128
          %s1499 = scalar_lea.hbm %s3, %s1498
          %s1500 = sshll.u32 %s1489, 4
          %s1501 = int_to_ptr.vmem [resolvable:$true] %s1500
          %1506 = dma.vmem_to_hbm [thread:$0]  %s1501, 2048, %s1499, %s1486, 128, 128, 8
        $region36: #{tpu_custom_call.1} parent=31 // pred_fallthru
          _
      $region32: #{tpu_custom_call.1} parent=5 // pred_fallthru
        _
      %p1507 = scmp.le.s32.totalorder 2, %s12
      // Predicated region
      $region37: #{tpu_custom_call.1} parent=5 // pred_check
        %p1508 = pneg %p1507
      $region38: #{tpu_custom_call.1} parent=5 // pred_check_branch
        %1510 = sbr.rel (%p1508) target = $region40
      $region39: #{tpu_custom_call.1} parent=5 // pred_region
        %s1511 = ssub.s32 %s12, 2
        // Predicated region
        $region41: #{tpu_custom_call.1} parent=39 // pred_check
          %p1512 = pneg %p109
        $region42: #{tpu_custom_call.1} parent=39 // pred_check_branch
          %1514 = sbr.rel (%p1512) target = $region44
        $region43: #{tpu_custom_call.1} parent=39 // pred_region
          %s1515 = sand.u32 %s94, 1
          %s1516 = scalar_lea.sflag [#allocation3], %s1515
          %s1517 = sand.u32 %s94, 1
          %s1518 = smul.addr %s1517, 128
          %s1519 = scalar_lea.vmem [#allocation2], %s1518
          %1520 = dma.done %s1516, 2048
        $region44: #{tpu_custom_call.1} parent=39 // pred_fallthru
          _
      $region40: #{tpu_custom_call.1} parent=5 // pred_fallthru
        _
    $region6: #{tpu_custom_call.1} parent=1 // loop_footer
      %s16 = sadd.s32 1, %s12
    $region7: #{tpu_custom_call.1} parent=1 // loop_footer_branch
      %11 = sbr.rel target = $region3
    $region8: #{tpu_custom_call.1} parent=1 // loop_exit
      _
    %1521 = vsyncpa [#allocation3], 1
    %s1522 = scalar_lea.sflag [#allocation3], 1
    %1523 = vsyncpa %s1522, 1

</llo_original>
